<compile_context>
chip_gen: v5e
topology: v5e:2x2
jax: 0.10.0
libtpu: 0.0.40
codegen_flags: <defaults>
</compile_context>

<pallas_src>
import jax
import jax.numpy as jnp
import numpy as np
from jax import lax
from jax.experimental import pallas as pl
from jax.experimental.pallas import tpu as pltpu

# ----------------------------- model hyper-params (small, consistent w/ module)
BATCH = 2
SEQ = 8              # number of face landmarks fed in (<= max_len 468)
IN_DIM = 3           # (x, y, z) per landmark
IN_PAD = 8           # pad the tiny contraction dim 3 -> 8 (zero-padded, exact)
DIM = 32             # d_model
NUM_HEADS = 4
HEAD_DIM = DIM // NUM_HEADS
FF_DIM = 64
NUM_LAYERS = 2
NUM_CLASSES = 7
OUT_PAD = 128        # lane-dense output width (sliced back to NUM_CLASSES)
ROWS = BATCH * SEQ   # batch folded into the row dim of every matmul
HROWS = NUM_HEADS * ROWS   # 64: all-head key rows for the block-diagonal attention
QKV = 3 * DIM
SCALE = 1.0 / float(np.sqrt(HEAD_DIM))
LN_EPS = 1e-5

# --------------------------------------------- packed parameter slab layout
SLAB_LANES = 128
R_PROJ = 0                       # (IN_PAD, DIM)  input projection weight
R_PEB = R_PROJ + IN_PAD          # (ROWS, DIM)    positional enc + proj bias (tiled)
R_AMASK = R_PEB + ROWS           # (ROWS, HROWS)  additive batch block-diag mask
R_HMASK = R_AMASK + ROWS         # (HROWS, DIM)   head-select mask
R_MISC = R_HMASK + HROWS         # (8, 128): rows 0-1 pool, 2 norm_g, 3 norm_b, 4 fc_b
R_FCW = R_MISC + 8               # (DIM, 128)     classifier weight (lane padded)
R_LAYER = R_FCW + DIM            # per-layer blocks start here
L_QKVW = 0                       # (DIM, QKV)     fused QKV weight (Q pre-scaled)
L_OUTW = DIM                     # (DIM, DIM)
L_FF1W = 2 * DIM                 # (DIM, FF_DIM)
L_FF2W = 3 * DIM                 # (FF_DIM, DIM)
L_VEC = 3 * DIM + FF_DIM         # (8, QKV)       per-layer bias / gain rows
L_STRIDE = L_VEC + 8
SLAB_ROWS = R_LAYER + NUM_LAYERS * L_STRIDE      # 480


def _layer_norm(x, g, b):
    # variance via E[x^2] - mu^2: two independent lane reductions (shorter chain)
    mu = jnp.mean(x, axis=-1, keepdims=True)
    ex2 = jnp.mean(x * x, axis=-1, keepdims=True)
    var = ex2 - mu * mu
    return (x - mu) * lax.rsqrt(var + LN_EPS) * g + b


# --------------------------------------------------------------- Pallas kernel
def _forward_kernel(x_ref, slab_ref, o_ref):
    x = x_ref[...]                                           # (ROWS, IN_PAD)
    proj_w = slab_ref[R_PROJ:R_PROJ + IN_PAD, 0:DIM]         # (IN_PAD, DIM)
    pe_b = slab_ref[R_PEB:R_PEB + ROWS, 0:DIM]               # (ROWS, DIM)
    amask = slab_ref[R_AMASK:R_AMASK + ROWS, 0:HROWS]        # (ROWS, HROWS)
    hmask = slab_ref[R_HMASK:R_HMASK + HROWS, 0:DIM]         # (HROWS, DIM)

    # input projection (Linear(3, dim)) + positional encoding + bias (prefolded)
    h = jnp.dot(x, proj_w, preferred_element_type=jnp.float32) + pe_b

    # transformer encoder layers (post-norm, ReLU FFN, dropout = identity)
    for l in range(NUM_LAYERS):
        base = R_LAYER + l * L_STRIDE
        qkv_w = slab_ref[base + L_QKVW:base + L_QKVW + DIM, 0:QKV]
        out_w = slab_ref[base + L_OUTW:base + L_OUTW + DIM, 0:DIM]
        ff1_w = slab_ref[base + L_FF1W:base + L_FF1W + DIM, 0:FF_DIM]
        ff2_w = slab_ref[base + L_FF2W:base + L_FF2W + FF_DIM, 0:DIM]
        vecs = slab_ref[base + L_VEC:base + L_VEC + 8, 0:QKV]
        qkv_b = vecs[0:1, 0:QKV]           # Q part pre-scaled
        out_b = vecs[1:2, 0:DIM]
        ln1_g = vecs[2:3, 0:DIM]
        ln1_b = vecs[3:4, 0:DIM]
        ff1_b = vecs[4:5, 0:FF_DIM]
        ff2_b = vecs[5:6, 0:DIM]
        ln2_g = vecs[6:7, 0:DIM]
        ln2_b = vecs[7:8, 0:DIM]

        # fused Q/K/V projection: one matmul per layer
        qkv = jnp.dot(h, qkv_w, preferred_element_type=jnp.float32) + qkv_b
        q = qkv[:, 0:DIM]
        k = qkv[:, DIM:2 * DIM]
        v = qkv[:, 2 * DIM:QKV]

        # All-head attention via block-diagonal K/V slabs:
        #   k_big[hd*ROWS + c, d] = k[c, d] * [d in head hd]   (same for v)
        # so ONE contraction over DIM gives all-head scores, and ONE matmul of
        # the exp-weights against v_big gives the already-concatenated context.
        k_big = jnp.concatenate([k] * NUM_HEADS, axis=0) * hmask   # (HROWS, DIM)
        v_big = jnp.concatenate([v] * NUM_HEADS, axis=0) * hmask   # (HROWS, DIM)

        # scores (no transpose: contract dim 1 of both) + batch block-diag mask
        s = lax.dot_general(q, k_big, (((1,), (1,)), ((), ())),
                            preferred_element_type=jnp.float32) + amask
        # row-global max is >= every per-head max -> exact & overflow-safe
        s = s - jnp.max(s, axis=-1, keepdims=True)
        p = jnp.exp(s)                                             # (ROWS, HROWS)
        ctx_un = jnp.dot(p, v_big, preferred_element_type=jnp.float32)   # (ROWS, DIM)
        denom = jnp.dot(p, hmask, preferred_element_type=jnp.float32)    # per-head sums
        ctx = ctx_un * pl.reciprocal(denom, approx=True)

        attn = jnp.dot(ctx, out_w, preferred_element_type=jnp.float32) + out_b
        h = _layer_norm(h + attn, ln1_g, ln1_b)

        f1 = jnp.maximum(
            jnp.dot(h, ff1_w, preferred_element_type=jnp.float32) + ff1_b, 0.0)
        f2 = jnp.dot(f1, ff2_w, preferred_element_type=jnp.float32) + ff2_b
        h = _layer_norm(h + f2, ln2_g, ln2_b)

    # final LayerNorm
    norm_g = slab_ref[R_MISC + 2:R_MISC + 3, 0:DIM]
    norm_b = slab_ref[R_MISC + 3:R_MISC + 4, 0:DIM]
    h = _layer_norm(h, norm_g, norm_b)

    # per-example mean pool over the sequence via a precomputed pooling matrix
    pool = slab_ref[R_MISC:R_MISC + BATCH, 0:ROWS]                 # (BATCH, ROWS)
    pooled = jnp.dot(pool, h, preferred_element_type=jnp.float32)  # (BATCH, DIM)

    # classifier head (lane-dense, padded to OUT_PAD)
    fc_w = slab_ref[R_FCW:R_FCW + DIM, :]
    fc_b = slab_ref[R_MISC + 4:R_MISC + 5, :]
    o_ref[...] = jnp.dot(pooled, fc_w, preferred_element_type=jnp.float32) + fc_b


# ----------------------------------------------------------- parameter packing
def pack_params(p):
    """Fold SCALE into Q, fuse QKV, precompute static masks / pool matrix, and
    consolidate everything into one 128-lane-aligned (SLAB_ROWS, 128) slab."""

    def blk(a, rows):
        a = jnp.asarray(a, jnp.float32)
        return jnp.pad(a, ((0, rows - a.shape[0]), (0, SLAB_LANES - a.shape[1])))

    def padlane(a):
        a = jnp.asarray(a, jnp.float32)
        return jnp.pad(a, ((0, 0), (0, SLAB_LANES - a.shape[-1])))

    blocks = []
    blocks.append(blk(p["proj_w"], IN_PAD))                                # R_PROJ
    blocks.append(blk(jnp.tile(p["pe"] + p["proj_b"], (BATCH, 1)), ROWS))  # R_PEB

    # additive mask: query r may only attend to keys c of the same example,
    # replicated across the NUM_HEADS blocks of 16 key lanes.
    r = np.arange(ROWS)[:, None]
    c = np.arange(HROWS)[None, :]
    amask = np.where((r // SEQ) == ((c % ROWS) // SEQ), 0.0, -1e30).astype(np.float32)
    blocks.append(blk(amask, ROWS))                                        # R_AMASK

    # head-select mask: rows hd*ROWS..hd*ROWS+15 keep only head hd's lanes.
    hmask = np.zeros((HROWS, DIM), np.float32)
    for hd in range(NUM_HEADS):
        hmask[hd * ROWS:(hd + 1) * ROWS, hd * HEAD_DIM:(hd + 1) * HEAD_DIM] = 1.0
    blocks.append(blk(hmask, HROWS))                                       # R_HMASK

    # misc block: mean-pool matrix, final-norm gamma/beta, fc bias
    pool = np.zeros((BATCH, ROWS), np.float32)
    for b in range(BATCH):
        pool[b, b * SEQ:(b + 1) * SEQ] = 1.0 / SEQ
    misc = jnp.concatenate([
        padlane(jnp.asarray(pool)),                   # rows 0-1
        padlane(p["norm_g"]),                         # row 2
        padlane(p["norm_b"]),                         # row 3
        padlane(p["fc_b"]),                           # row 4
        jnp.zeros((3, SLAB_LANES), jnp.float32),
    ], axis=0)
    blocks.append(misc)                                                    # R_MISC
    blocks.append(blk(p["fc_w"], DIM))                                     # R_FCW

    qw, qb = p["qkv_w"], p["qkv_b"]
    for l in range(NUM_LAYERS):
        qkv_w = jnp.concatenate([qw[l, 0] * SCALE, qw[l, 1], qw[l, 2]], axis=-1)
        blocks.append(blk(qkv_w, DIM))                                     # L_QKVW
        blocks.append(blk(p["out_w"][l], DIM))                             # L_OUTW
        blocks.append(blk(p["ff1_w"][l], DIM))                             # L_FF1W
        blocks.append(blk(p["ff2_w"][l], FF_DIM))                          # L_FF2W
        qkv_b = jnp.concatenate([qb[l, 0] * SCALE, qb[l, 1], qb[l, 2]], axis=-1)
        vec = jnp.concatenate([
            padlane(qkv_b),
            padlane(p["out_b"][l]),
            padlane(p["ln1_g"][l]), padlane(p["ln1_b"][l]),
            padlane(p["ff1_b"][l]), padlane(p["ff2_b"][l]),
            padlane(p["ln2_g"][l]), padlane(p["ln2_b"][l]),
        ], axis=0)
        blocks.append(vec)                                                 # L_VEC

    slab = jnp.concatenate(blocks, axis=0)
    assert slab.shape == (SLAB_ROWS, SLAB_LANES)
    return slab


def face_emotion_transformer(x, params):
    """x: (BATCH, SEQ, IN_DIM) float32 -> logits (BATCH, NUM_CLASSES)."""
    x2d = jnp.pad(x, ((0, 0), (0, 0), (0, IN_PAD - IN_DIM))).reshape(ROWS, IN_PAD)
    slab = pack_params(params)

    flops = (2 * ROWS * (IN_PAD * DIM
                         + NUM_LAYERS * (DIM * QKV + DIM * HROWS + 2 * HROWS * DIM
                                         + DIM * DIM + DIM * FF_DIM + FF_DIM * DIM))
             + 2 * BATCH * (ROWS * DIM + DIM * OUT_PAD))

    out = pl.pallas_call(
        _forward_kernel,
        out_shape=jax.ShapeDtypeStruct((BATCH, OUT_PAD), jnp.float32),
        in_specs=[pl.BlockSpec(memory_space=pltpu.MemorySpace.VMEM),
                  pl.BlockSpec(memory_space=pltpu.MemorySpace.VMEM)],
        out_specs=pl.BlockSpec(memory_space=pltpu.MemorySpace.VMEM),
        cost_estimate=pl.CostEstimate(
            flops=flops,
            transcendentals=NUM_LAYERS * ROWS * (HROWS + DIM) + 5 * ROWS * DIM,
            bytes_accessed=4 * (x2d.size + slab.size + BATCH * OUT_PAD)),
    )(x2d, slab)
    return out[:, :NUM_CLASSES]


# -------------------------------------------------------- parameters / glue
def make_positional_encoding(dim, max_len):
    position = np.arange(max_len, dtype=np.float32)[:, None]
    div_term = np.exp(np.arange(0, dim, 2, dtype=np.float32) *
                      (-(np.log(10000.0) / dim)))
    pe = np.zeros((max_len, dim), dtype=np.float32)
    pe[:, 0::2] = np.sin(position * div_term)
    pe[:, 1::2] = np.cos(position * div_term)
    return jnp.asarray(pe)


def init_params(key):
    keys = iter(jax.random.split(key, 64))

    def w(shape, scale=0.05):
        return (scale * jax.random.normal(next(keys), shape)).astype(jnp.float32)

    proj_w3 = w((IN_DIM, DIM))
    proj_w = jnp.pad(proj_w3, ((0, IN_PAD - IN_DIM), (0, 0)))  # zero-pad rows
    params = {
        "proj_w": proj_w,
        "proj_b": w((1, DIM), 0.02),
        "pe": make_positional_encoding(DIM, 468)[:SEQ],
        "qkv_w": w((NUM_LAYERS, 3, DIM, DIM)),
        "qkv_b": w((NUM_LAYERS, 3, 1, DIM), 0.02),
        "out_w": w((NUM_LAYERS, DIM, DIM)),
        "out_b": w((NUM_LAYERS, 1, DIM), 0.02),
        "ln1_g": jnp.ones((NUM_LAYERS, 1, DIM), jnp.float32) + w((NUM_LAYERS, 1, DIM), 0.01),
        "ln1_b": w((NUM_LAYERS, 1, DIM), 0.02),
        "ff1_w": w((NUM_LAYERS, DIM, FF_DIM)),
        "ff1_b": w((NUM_LAYERS, 1, FF_DIM), 0.02),
        "ff2_w": w((NUM_LAYERS, FF_DIM, DIM)),
        "ff2_b": w((NUM_LAYERS, 1, DIM), 0.02),
        "ln2_g": jnp.ones((NUM_LAYERS, 1, DIM), jnp.float32) + w((NUM_LAYERS, 1, DIM), 0.01),
        "ln2_b": w((NUM_LAYERS, 1, DIM), 0.02),
        "norm_g": jnp.ones((1, DIM), jnp.float32) + w((1, DIM), 0.01),
        "norm_b": w((1, DIM), 0.02),
        "fc_w": w((DIM, NUM_CLASSES)),
        "fc_b": w((1, NUM_CLASSES), 0.02),
    }
    return params


# -------------------------------------------------- pure-JAX reference (check)
def reference_forward(x, params):
    def one(xe):  # xe: (SEQ, IN_DIM)
        h = xe @ params["proj_w"][:IN_DIM] + params["proj_b"]
        h = h + params["pe"]
        for l in range(NUM_LAYERS):
            q = h @ params["qkv_w"][l, 0] + params["qkv_b"][l, 0]
            k = h @ params["qkv_w"][l, 1] + params["qkv_b"][l, 1]
            v = h @ params["qkv_w"][l, 2] + params["qkv_b"][l, 2]
            heads = []
            for hd in range(NUM_HEADS):
                lo, hi = hd * HEAD_DIM, (hd + 1) * HEAD_DIM
                s = (q[:, lo:hi] * SCALE) @ k[:, lo:hi].T
                p = jax.nn.softmax(s, axis=-1)
                heads.append(p @ v[:, lo:hi])
            attn = jnp.concatenate(heads, axis=-1) @ params["out_w"][l] + params["out_b"][l]
            h = _layer_norm(h + attn, params["ln1_g"][l], params["ln1_b"][l])
            f = jnp.maximum(h @ params["ff1_w"][l] + params["ff1_b"][l], 0.0)
            f = f @ params["ff2_w"][l] + params["ff2_b"][l]
            h = _layer_norm(h + f, params["ln2_g"][l], params["ln2_b"][l])
        h = _layer_norm(h, params["norm_g"], params["norm_b"])
        pooled = jnp.mean(h, axis=0, keepdims=True)
        return (pooled @ params["fc_w"] + params["fc_b"])[0]
    return jax.vmap(one)(x)


if __name__ == "__main__":
    key = jax.random.PRNGKey(0)
    k_param, k_x = jax.random.split(key)
    params = init_params(k_param)
    x = jax.random.normal(k_x, (BATCH, SEQ, IN_DIM), dtype=jnp.float32)

    out = face_emotion_transformer(x, params)
    out = jax.block_until_ready(out)

    ref = jax.block_until_ready(reference_forward(x, params))
    assert out.shape == (BATCH, NUM_CLASSES)
    np.testing.assert_allclose(np.asarray(out), np.asarray(ref), rtol=1e-3, atol=1e-3)

    print("KERNEL_OK")
</pallas_src>

<mosaic_0001>
module attributes {stable_mosaic.version = 11 : i64} {
  func.func @_forward_kernel(%arg0: memref<16x8xf32, #tpu.memory_space<vmem>>, %arg1: memref<480x128xf32, #tpu.memory_space<vmem>>, %arg2: memref<2x128xf32, #tpu.memory_space<vmem>>) attributes {dimension_semantics = [], scalar_prefetch = 0 : i64, scratch_operands = 0 : i64, tpu.core_type = #tpu.core_type<tc>} {
    %c0 = arith.constant 0 : index
    %c0_0 = arith.constant 0 : index
    %0 = vector.load %arg0[%c0, %c0_0] : memref<16x8xf32, #tpu.memory_space<vmem>>, vector<16x8xf32>
    %c0_1 = arith.constant 0 : index
    %c0_2 = arith.constant 0 : index
    %1 = vector.load %arg1[%c0_1, %c0_2] : memref<480x128xf32, #tpu.memory_space<vmem>>, vector<8x32xf32>
    %c8 = arith.constant 8 : index
    %c0_3 = arith.constant 0 : index
    %2 = vector.load %arg1[%c8, %c0_3] : memref<480x128xf32, #tpu.memory_space<vmem>>, vector<16x32xf32>
    %c24 = arith.constant 24 : index
    %c0_4 = arith.constant 0 : index
    %3 = vector.load %arg1[%c24, %c0_4] : memref<480x128xf32, #tpu.memory_space<vmem>>, vector<16x64xf32>
    %c40 = arith.constant 40 : index
    %c0_5 = arith.constant 0 : index
    %4 = vector.load %arg1[%c40, %c0_5] : memref<480x128xf32, #tpu.memory_space<vmem>>, vector<64x32xf32>
    %cst = arith.constant dense<0.000000e+00> : vector<16x32xf32>
    %5 = tpu.matmul %0, %1, %cst {dimension_numbers = #tpu.dot_dimension_numbers<[1], [0], [0], [1], [0, 0, 1, 1], [], []>} : vector<16x8xf32>, vector<8x32xf32>, vector<16x32xf32> -> vector<16x32xf32>
    %6 = arith.addf %5, %2 : vector<16x32xf32>
    %c144 = arith.constant 144 : index
    %c0_6 = arith.constant 0 : index
    %7 = vector.load %arg1[%c144, %c0_6] : memref<480x128xf32, #tpu.memory_space<vmem>>, vector<32x96xf32>
    %c176 = arith.constant 176 : index
    %c0_7 = arith.constant 0 : index
    %8 = vector.load %arg1[%c176, %c0_7] : memref<480x128xf32, #tpu.memory_space<vmem>>, vector<32x32xf32>
    %c208 = arith.constant 208 : index
    %c0_8 = arith.constant 0 : index
    %9 = vector.load %arg1[%c208, %c0_8] : memref<480x128xf32, #tpu.memory_space<vmem>>, vector<32x64xf32>
    %c240 = arith.constant 240 : index
    %c0_9 = arith.constant 0 : index
    %10 = vector.load %arg1[%c240, %c0_9] : memref<480x128xf32, #tpu.memory_space<vmem>>, vector<64x32xf32>
    %c304 = arith.constant 304 : index
    %c0_10 = arith.constant 0 : index
    %11 = vector.load %arg1[%c304, %c0_10] : memref<480x128xf32, #tpu.memory_space<vmem>>, vector<8x96xf32>
    %12 = vector.extract_strided_slice %11 {offsets = [0, 0], sizes = [1, 96], strides = [1, 1]} : vector<8x96xf32> to vector<1x96xf32>
    %13 = vector.extract_strided_slice %11 {offsets = [1, 0], sizes = [1, 32], strides = [1, 1]} : vector<8x96xf32> to vector<1x32xf32>
    %14 = vector.extract_strided_slice %11 {offsets = [2, 0], sizes = [1, 32], strides = [1, 1]} : vector<8x96xf32> to vector<1x32xf32>
    %15 = vector.extract_strided_slice %11 {offsets = [3, 0], sizes = [1, 32], strides = [1, 1]} : vector<8x96xf32> to vector<1x32xf32>
    %16 = vector.extract_strided_slice %11 {offsets = [4, 0], sizes = [1, 64], strides = [1, 1]} : vector<8x96xf32> to vector<1x64xf32>
    %17 = vector.extract_strided_slice %11 {offsets = [5, 0], sizes = [1, 32], strides = [1, 1]} : vector<8x96xf32> to vector<1x32xf32>
    %18 = vector.extract_strided_slice %11 {offsets = [6, 0], sizes = [1, 32], strides = [1, 1]} : vector<8x96xf32> to vector<1x32xf32>
    %19 = vector.extract_strided_slice %11 {offsets = [7, 0], sizes = [1, 32], strides = [1, 1]} : vector<8x96xf32> to vector<1x32xf32>
    %cst_11 = arith.constant dense<0.000000e+00> : vector<16x96xf32>
    %20 = tpu.matmul %6, %7, %cst_11 {dimension_numbers = #tpu.dot_dimension_numbers<[1], [0], [0], [1], [0, 0, 1, 1], [], []>} : vector<16x32xf32>, vector<32x96xf32>, vector<16x96xf32> -> vector<16x96xf32>
    %21 = vector.broadcast %12 : vector<1x96xf32> to vector<16x96xf32>
    %22 = arith.addf %20, %21 : vector<16x96xf32>
    %23 = vector.extract_strided_slice %22 {offsets = [0, 0], sizes = [16, 32], strides = [1, 1]} : vector<16x96xf32> to vector<16x32xf32>
    %24 = vector.extract_strided_slice %22 {offsets = [0, 32], sizes = [16, 32], strides = [1, 1]} : vector<16x96xf32> to vector<16x32xf32>
    %25 = vector.extract_strided_slice %22 {offsets = [0, 64], sizes = [16, 32], strides = [1, 1]} : vector<16x96xf32> to vector<16x32xf32>
    %26 = tpu.concatenate %24, %24, %24, %24 in 0 : vector<16x32xf32>, vector<16x32xf32>, vector<16x32xf32>, vector<16x32xf32> -> vector<64x32xf32>
    %27 = arith.mulf %26, %4 : vector<64x32xf32>
    %28 = tpu.concatenate %25, %25, %25, %25 in 0 : vector<16x32xf32>, vector<16x32xf32>, vector<16x32xf32>, vector<16x32xf32> -> vector<64x32xf32>
    %29 = arith.mulf %28, %4 : vector<64x32xf32>
    %cst_12 = arith.constant dense<0.000000e+00> : vector<16x64xf32>
    %30 = tpu.matmul %23, %27, %cst_12 {dimension_numbers = #tpu.dot_dimension_numbers<[1], [1], [0], [0], [0, 0, 1, 0], [], []>} : vector<16x32xf32>, vector<64x32xf32>, vector<16x64xf32> -> vector<16x64xf32>
    %31 = arith.addf %30, %3 : vector<16x64xf32>
    %cst_13 = arith.constant dense<0xFF800000> : vector<16xf32>
    %32 = vector.multi_reduction <maximumf>, %31, %cst_13 [1] : vector<16x64xf32> to vector<16xf32>
    %33 = vector.shape_cast %32 : vector<16xf32> to vector<16x1xf32>
    %34 = vector.broadcast %33 : vector<16x1xf32> to vector<16x64xf32>
    %35 = arith.subf %31, %34 : vector<16x64xf32>
    %36 = math.exp %35 : vector<16x64xf32>
    %cst_14 = arith.constant dense<0.000000e+00> : vector<16x32xf32>
    %37 = tpu.matmul %36, %29, %cst_14 {dimension_numbers = #tpu.dot_dimension_numbers<[1], [0], [0], [1], [0, 0, 1, 1], [], []>} : vector<16x64xf32>, vector<64x32xf32>, vector<16x32xf32> -> vector<16x32xf32>
    %cst_15 = arith.constant dense<0.000000e+00> : vector<16x32xf32>
    %38 = tpu.matmul %36, %4, %cst_15 {dimension_numbers = #tpu.dot_dimension_numbers<[1], [0], [0], [1], [0, 0, 1, 1], [], []>} : vector<16x64xf32>, vector<64x32xf32>, vector<16x32xf32> -> vector<16x32xf32>
    %39 = tpu.reciprocal %38 {approx = true} : vector<16x32xf32> -> vector<16x32xf32>
    %40 = arith.mulf %37, %39 : vector<16x32xf32>
    %cst_16 = arith.constant dense<0.000000e+00> : vector<16x32xf32>
    %41 = tpu.matmul %40, %8, %cst_16 {dimension_numbers = #tpu.dot_dimension_numbers<[1], [0], [0], [1], [0, 0, 1, 1], [], []>} : vector<16x32xf32>, vector<32x32xf32>, vector<16x32xf32> -> vector<16x32xf32>
    %42 = vector.broadcast %13 : vector<1x32xf32> to vector<16x32xf32>
    %43 = arith.addf %41, %42 : vector<16x32xf32>
    %44 = arith.addf %6, %43 : vector<16x32xf32>
    %cst_17 = arith.constant dense<0.000000e+00> : vector<16xf32>
    %45 = vector.multi_reduction <add>, %44, %cst_17 [1] : vector<16x32xf32> to vector<16xf32>
    %46 = vector.shape_cast %45 : vector<16xf32> to vector<16x1xf32>
    %cst_18 = arith.constant 3.200000e+01 : f32
    %47 = vector.broadcast %cst_18 : f32 to vector<16x1xf32>
    %48 = arith.divf %46, %47 : vector<16x1xf32>
    %49 = arith.mulf %44, %44 : vector<16x32xf32>
    %cst_19 = arith.constant dense<0.000000e+00> : vector<16xf32>
    %50 = vector.multi_reduction <add>, %49, %cst_19 [1] : vector<16x32xf32> to vector<16xf32>
    %51 = vector.shape_cast %50 : vector<16xf32> to vector<16x1xf32>
    %cst_20 = arith.constant 3.200000e+01 : f32
    %52 = vector.broadcast %cst_20 : f32 to vector<16x1xf32>
    %53 = arith.divf %51, %52 : vector<16x1xf32>
    %54 = arith.mulf %48, %48 : vector<16x1xf32>
    %55 = arith.subf %53, %54 : vector<16x1xf32>
    %56 = vector.broadcast %48 : vector<16x1xf32> to vector<16x32xf32>
    %57 = arith.subf %44, %56 : vector<16x32xf32>
    %cst_21 = arith.constant 9.99999974E-6 : f32
    %58 = vector.broadcast %cst_21 : f32 to vector<16x1xf32>
    %59 = arith.addf %55, %58 : vector<16x1xf32>
    %60 = math.rsqrt %59 : vector<16x1xf32>
    %61 = vector.broadcast %60 : vector<16x1xf32> to vector<16x32xf32>
    %62 = arith.mulf %57, %61 : vector<16x32xf32>
    %63 = vector.broadcast %14 : vector<1x32xf32> to vector<16x32xf32>
    %64 = arith.mulf %62, %63 : vector<16x32xf32>
    %65 = vector.broadcast %15 : vector<1x32xf32> to vector<16x32xf32>
    %66 = arith.addf %64, %65 : vector<16x32xf32>
    %cst_22 = arith.constant dense<0.000000e+00> : vector<16x64xf32>
    %67 = tpu.matmul %66, %9, %cst_22 {dimension_numbers = #tpu.dot_dimension_numbers<[1], [0], [0], [1], [0, 0, 1, 1], [], []>} : vector<16x32xf32>, vector<32x64xf32>, vector<16x64xf32> -> vector<16x64xf32>
    %68 = vector.broadcast %16 : vector<1x64xf32> to vector<16x64xf32>
    %69 = arith.addf %67, %68 : vector<16x64xf32>
    %cst_23 = arith.constant 0.000000e+00 : f32
    %70 = vector.broadcast %cst_23 : f32 to vector<16x64xf32>
    %71 = arith.maximumf %69, %70 : vector<16x64xf32>
    %cst_24 = arith.constant dense<0.000000e+00> : vector<16x32xf32>
    %72 = tpu.matmul %71, %10, %cst_24 {dimension_numbers = #tpu.dot_dimension_numbers<[1], [0], [0], [1], [0, 0, 1, 1], [], []>} : vector<16x64xf32>, vector<64x32xf32>, vector<16x32xf32> -> vector<16x32xf32>
    %73 = vector.broadcast %17 : vector<1x32xf32> to vector<16x32xf32>
    %74 = arith.addf %72, %73 : vector<16x32xf32>
    %75 = arith.addf %66, %74 : vector<16x32xf32>
    %cst_25 = arith.constant dense<0.000000e+00> : vector<16xf32>
    %76 = vector.multi_reduction <add>, %75, %cst_25 [1] : vector<16x32xf32> to vector<16xf32>
    %77 = vector.shape_cast %76 : vector<16xf32> to vector<16x1xf32>
    %cst_26 = arith.constant 3.200000e+01 : f32
    %78 = vector.broadcast %cst_26 : f32 to vector<16x1xf32>
    %79 = arith.divf %77, %78 : vector<16x1xf32>
    %80 = arith.mulf %75, %75 : vector<16x32xf32>
    %cst_27 = arith.constant dense<0.000000e+00> : vector<16xf32>
    %81 = vector.multi_reduction <add>, %80, %cst_27 [1] : vector<16x32xf32> to vector<16xf32>
    %82 = vector.shape_cast %81 : vector<16xf32> to vector<16x1xf32>
    %cst_28 = arith.constant 3.200000e+01 : f32
    %83 = vector.broadcast %cst_28 : f32 to vector<16x1xf32>
    %84 = arith.divf %82, %83 : vector<16x1xf32>
    %85 = arith.mulf %79, %79 : vector<16x1xf32>
    %86 = arith.subf %84, %85 : vector<16x1xf32>
    %87 = vector.broadcast %79 : vector<16x1xf32> to vector<16x32xf32>
    %88 = arith.subf %75, %87 : vector<16x32xf32>
    %cst_29 = arith.constant 9.99999974E-6 : f32
    %89 = vector.broadcast %cst_29 : f32 to vector<16x1xf32>
    %90 = arith.addf %86, %89 : vector<16x1xf32>
    %91 = math.rsqrt %90 : vector<16x1xf32>
    %92 = vector.broadcast %91 : vector<16x1xf32> to vector<16x32xf32>
    %93 = arith.mulf %88, %92 : vector<16x32xf32>
    %94 = vector.broadcast %18 : vector<1x32xf32> to vector<16x32xf32>
    %95 = arith.mulf %93, %94 : vector<16x32xf32>
    %96 = vector.broadcast %19 : vector<1x32xf32> to vector<16x32xf32>
    %97 = arith.addf %95, %96 : vector<16x32xf32>
    %c312 = arith.constant 312 : index
    %c0_30 = arith.constant 0 : index
    %98 = vector.load %arg1[%c312, %c0_30] : memref<480x128xf32, #tpu.memory_space<vmem>>, vector<32x96xf32>
    %c344 = arith.constant 344 : index
    %c0_31 = arith.constant 0 : index
    %99 = vector.load %arg1[%c344, %c0_31] : memref<480x128xf32, #tpu.memory_space<vmem>>, vector<32x32xf32>
    %c376 = arith.constant 376 : index
    %c0_32 = arith.constant 0 : index
    %100 = vector.load %arg1[%c376, %c0_32] : memref<480x128xf32, #tpu.memory_space<vmem>>, vector<32x64xf32>
    %c408 = arith.constant 408 : index
    %c0_33 = arith.constant 0 : index
    %101 = vector.load %arg1[%c408, %c0_33] : memref<480x128xf32, #tpu.memory_space<vmem>>, vector<64x32xf32>
    %c472 = arith.constant 472 : index
    %c0_34 = arith.constant 0 : index
    %102 = vector.load %arg1[%c472, %c0_34] : memref<480x128xf32, #tpu.memory_space<vmem>>, vector<8x96xf32>
    %103 = vector.extract_strided_slice %102 {offsets = [0, 0], sizes = [1, 96], strides = [1, 1]} : vector<8x96xf32> to vector<1x96xf32>
    %104 = vector.extract_strided_slice %102 {offsets = [1, 0], sizes = [1, 32], strides = [1, 1]} : vector<8x96xf32> to vector<1x32xf32>
    %105 = vector.extract_strided_slice %102 {offsets = [2, 0], sizes = [1, 32], strides = [1, 1]} : vector<8x96xf32> to vector<1x32xf32>
    %106 = vector.extract_strided_slice %102 {offsets = [3, 0], sizes = [1, 32], strides = [1, 1]} : vector<8x96xf32> to vector<1x32xf32>
    %107 = vector.extract_strided_slice %102 {offsets = [4, 0], sizes = [1, 64], strides = [1, 1]} : vector<8x96xf32> to vector<1x64xf32>
    %108 = vector.extract_strided_slice %102 {offsets = [5, 0], sizes = [1, 32], strides = [1, 1]} : vector<8x96xf32> to vector<1x32xf32>
    %109 = vector.extract_strided_slice %102 {offsets = [6, 0], sizes = [1, 32], strides = [1, 1]} : vector<8x96xf32> to vector<1x32xf32>
    %110 = vector.extract_strided_slice %102 {offsets = [7, 0], sizes = [1, 32], strides = [1, 1]} : vector<8x96xf32> to vector<1x32xf32>
    %cst_35 = arith.constant dense<0.000000e+00> : vector<16x96xf32>
    %111 = tpu.matmul %97, %98, %cst_35 {dimension_numbers = #tpu.dot_dimension_numbers<[1], [0], [0], [1], [0, 0, 1, 1], [], []>} : vector<16x32xf32>, vector<32x96xf32>, vector<16x96xf32> -> vector<16x96xf32>
    %112 = vector.broadcast %103 : vector<1x96xf32> to vector<16x96xf32>
    %113 = arith.addf %111, %112 : vector<16x96xf32>
    %114 = vector.extract_strided_slice %113 {offsets = [0, 0], sizes = [16, 32], strides = [1, 1]} : vector<16x96xf32> to vector<16x32xf32>
    %115 = vector.extract_strided_slice %113 {offsets = [0, 32], sizes = [16, 32], strides = [1, 1]} : vector<16x96xf32> to vector<16x32xf32>
    %116 = vector.extract_strided_slice %113 {offsets = [0, 64], sizes = [16, 32], strides = [1, 1]} : vector<16x96xf32> to vector<16x32xf32>
    %117 = tpu.concatenate %115, %115, %115, %115 in 0 : vector<16x32xf32>, vector<16x32xf32>, vector<16x32xf32>, vector<16x32xf32> -> vector<64x32xf32>
    %118 = arith.mulf %117, %4 : vector<64x32xf32>
    %119 = tpu.concatenate %116, %116, %116, %116 in 0 : vector<16x32xf32>, vector<16x32xf32>, vector<16x32xf32>, vector<16x32xf32> -> vector<64x32xf32>
    %120 = arith.mulf %119, %4 : vector<64x32xf32>
    %cst_36 = arith.constant dense<0.000000e+00> : vector<16x64xf32>
    %121 = tpu.matmul %114, %118, %cst_36 {dimension_numbers = #tpu.dot_dimension_numbers<[1], [1], [0], [0], [0, 0, 1, 0], [], []>} : vector<16x32xf32>, vector<64x32xf32>, vector<16x64xf32> -> vector<16x64xf32>
    %122 = arith.addf %121, %3 : vector<16x64xf32>
    %cst_37 = arith.constant dense<0xFF800000> : vector<16xf32>
    %123 = vector.multi_reduction <maximumf>, %122, %cst_37 [1] : vector<16x64xf32> to vector<16xf32>
    %124 = vector.shape_cast %123 : vector<16xf32> to vector<16x1xf32>
    %125 = vector.broadcast %124 : vector<16x1xf32> to vector<16x64xf32>
    %126 = arith.subf %122, %125 : vector<16x64xf32>
    %127 = math.exp %126 : vector<16x64xf32>
    %cst_38 = arith.constant dense<0.000000e+00> : vector<16x32xf32>
    %128 = tpu.matmul %127, %120, %cst_38 {dimension_numbers = #tpu.dot_dimension_numbers<[1], [0], [0], [1], [0, 0, 1, 1], [], []>} : vector<16x64xf32>, vector<64x32xf32>, vector<16x32xf32> -> vector<16x32xf32>
    %cst_39 = arith.constant dense<0.000000e+00> : vector<16x32xf32>
    %129 = tpu.matmul %127, %4, %cst_39 {dimension_numbers = #tpu.dot_dimension_numbers<[1], [0], [0], [1], [0, 0, 1, 1], [], []>} : vector<16x64xf32>, vector<64x32xf32>, vector<16x32xf32> -> vector<16x32xf32>
    %130 = tpu.reciprocal %129 {approx = true} : vector<16x32xf32> -> vector<16x32xf32>
    %131 = arith.mulf %128, %130 : vector<16x32xf32>
    %cst_40 = arith.constant dense<0.000000e+00> : vector<16x32xf32>
    %132 = tpu.matmul %131, %99, %cst_40 {dimension_numbers = #tpu.dot_dimension_numbers<[1], [0], [0], [1], [0, 0, 1, 1], [], []>} : vector<16x32xf32>, vector<32x32xf32>, vector<16x32xf32> -> vector<16x32xf32>
    %133 = vector.broadcast %104 : vector<1x32xf32> to vector<16x32xf32>
    %134 = arith.addf %132, %133 : vector<16x32xf32>
    %135 = arith.addf %97, %134 : vector<16x32xf32>
    %cst_41 = arith.constant dense<0.000000e+00> : vector<16xf32>
    %136 = vector.multi_reduction <add>, %135, %cst_41 [1] : vector<16x32xf32> to vector<16xf32>
    %137 = vector.shape_cast %136 : vector<16xf32> to vector<16x1xf32>
    %cst_42 = arith.constant 3.200000e+01 : f32
    %138 = vector.broadcast %cst_42 : f32 to vector<16x1xf32>
    %139 = arith.divf %137, %138 : vector<16x1xf32>
    %140 = arith.mulf %135, %135 : vector<16x32xf32>
    %cst_43 = arith.constant dense<0.000000e+00> : vector<16xf32>
    %141 = vector.multi_reduction <add>, %140, %cst_43 [1] : vector<16x32xf32> to vector<16xf32>
    %142 = vector.shape_cast %141 : vector<16xf32> to vector<16x1xf32>
    %cst_44 = arith.constant 3.200000e+01 : f32
    %143 = vector.broadcast %cst_44 : f32 to vector<16x1xf32>
    %144 = arith.divf %142, %143 : vector<16x1xf32>
    %145 = arith.mulf %139, %139 : vector<16x1xf32>
    %146 = arith.subf %144, %145 : vector<16x1xf32>
    %147 = vector.broadcast %139 : vector<16x1xf32> to vector<16x32xf32>
    %148 = arith.subf %135, %147 : vector<16x32xf32>
    %cst_45 = arith.constant 9.99999974E-6 : f32
    %149 = vector.broadcast %cst_45 : f32 to vector<16x1xf32>
    %150 = arith.addf %146, %149 : vector<16x1xf32>
    %151 = math.rsqrt %150 : vector<16x1xf32>
    %152 = vector.broadcast %151 : vector<16x1xf32> to vector<16x32xf32>
    %153 = arith.mulf %148, %152 : vector<16x32xf32>
    %154 = vector.broadcast %105 : vector<1x32xf32> to vector<16x32xf32>
    %155 = arith.mulf %153, %154 : vector<16x32xf32>
    %156 = vector.broadcast %106 : vector<1x32xf32> to vector<16x32xf32>
    %157 = arith.addf %155, %156 : vector<16x32xf32>
    %cst_46 = arith.constant dense<0.000000e+00> : vector<16x64xf32>
    %158 = tpu.matmul %157, %100, %cst_46 {dimension_numbers = #tpu.dot_dimension_numbers<[1], [0], [0], [1], [0, 0, 1, 1], [], []>} : vector<16x32xf32>, vector<32x64xf32>, vector<16x64xf32> -> vector<16x64xf32>
    %159 = vector.broadcast %107 : vector<1x64xf32> to vector<16x64xf32>
    %160 = arith.addf %158, %159 : vector<16x64xf32>
    %cst_47 = arith.constant 0.000000e+00 : f32
    %161 = vector.broadcast %cst_47 : f32 to vector<16x64xf32>
    %162 = arith.maximumf %160, %161 : vector<16x64xf32>
    %cst_48 = arith.constant dense<0.000000e+00> : vector<16x32xf32>
    %163 = tpu.matmul %162, %101, %cst_48 {dimension_numbers = #tpu.dot_dimension_numbers<[1], [0], [0], [1], [0, 0, 1, 1], [], []>} : vector<16x64xf32>, vector<64x32xf32>, vector<16x32xf32> -> vector<16x32xf32>
    %164 = vector.broadcast %108 : vector<1x32xf32> to vector<16x32xf32>
    %165 = arith.addf %163, %164 : vector<16x32xf32>
    %166 = arith.addf %157, %165 : vector<16x32xf32>
    %cst_49 = arith.constant dense<0.000000e+00> : vector<16xf32>
    %167 = vector.multi_reduction <add>, %166, %cst_49 [1] : vector<16x32xf32> to vector<16xf32>
    %168 = vector.shape_cast %167 : vector<16xf32> to vector<16x1xf32>
    %cst_50 = arith.constant 3.200000e+01 : f32
    %169 = vector.broadcast %cst_50 : f32 to vector<16x1xf32>
    %170 = arith.divf %168, %169 : vector<16x1xf32>
    %171 = arith.mulf %166, %166 : vector<16x32xf32>
    %cst_51 = arith.constant dense<0.000000e+00> : vector<16xf32>
    %172 = vector.multi_reduction <add>, %171, %cst_51 [1] : vector<16x32xf32> to vector<16xf32>
    %173 = vector.shape_cast %172 : vector<16xf32> to vector<16x1xf32>
    %cst_52 = arith.constant 3.200000e+01 : f32
    %174 = vector.broadcast %cst_52 : f32 to vector<16x1xf32>
    %175 = arith.divf %173, %174 : vector<16x1xf32>
    %176 = arith.mulf %170, %170 : vector<16x1xf32>
    %177 = arith.subf %175, %176 : vector<16x1xf32>
    %178 = vector.broadcast %170 : vector<16x1xf32> to vector<16x32xf32>
    %179 = arith.subf %166, %178 : vector<16x32xf32>
    %cst_53 = arith.constant 9.99999974E-6 : f32
    %180 = vector.broadcast %cst_53 : f32 to vector<16x1xf32>
    %181 = arith.addf %177, %180 : vector<16x1xf32>
    %182 = math.rsqrt %181 : vector<16x1xf32>
    %183 = vector.broadcast %182 : vector<16x1xf32> to vector<16x32xf32>
    %184 = arith.mulf %179, %183 : vector<16x32xf32>
    %185 = vector.broadcast %109 : vector<1x32xf32> to vector<16x32xf32>
    %186 = arith.mulf %184, %185 : vector<16x32xf32>
    %187 = vector.broadcast %110 : vector<1x32xf32> to vector<16x32xf32>
    %188 = arith.addf %186, %187 : vector<16x32xf32>
    %c106 = arith.constant 106 : index
    %c0_54 = arith.constant 0 : index
    %189 = vector.load %arg1[%c106, %c0_54] : memref<480x128xf32, #tpu.memory_space<vmem>>, vector<1x32xf32>
    %c107 = arith.constant 107 : index
    %c0_55 = arith.constant 0 : index
    %190 = vector.load %arg1[%c107, %c0_55] : memref<480x128xf32, #tpu.memory_space<vmem>>, vector<1x32xf32>
    %cst_56 = arith.constant dense<0.000000e+00> : vector<16xf32>
    %191 = vector.multi_reduction <add>, %188, %cst_56 [1] : vector<16x32xf32> to vector<16xf32>
    %192 = vector.shape_cast %191 : vector<16xf32> to vector<16x1xf32>
    %cst_57 = arith.constant 3.200000e+01 : f32
    %193 = vector.broadcast %cst_57 : f32 to vector<16x1xf32>
    %194 = arith.divf %192, %193 : vector<16x1xf32>
    %195 = arith.mulf %188, %188 : vector<16x32xf32>
    %cst_58 = arith.constant dense<0.000000e+00> : vector<16xf32>
    %196 = vector.multi_reduction <add>, %195, %cst_58 [1] : vector<16x32xf32> to vector<16xf32>
    %197 = vector.shape_cast %196 : vector<16xf32> to vector<16x1xf32>
    %cst_59 = arith.constant 3.200000e+01 : f32
    %198 = vector.broadcast %cst_59 : f32 to vector<16x1xf32>
    %199 = arith.divf %197, %198 : vector<16x1xf32>
    %200 = arith.mulf %194, %194 : vector<16x1xf32>
    %201 = arith.subf %199, %200 : vector<16x1xf32>
    %202 = vector.broadcast %194 : vector<16x1xf32> to vector<16x32xf32>
    %203 = arith.subf %188, %202 : vector<16x32xf32>
    %cst_60 = arith.constant 9.99999974E-6 : f32
    %204 = vector.broadcast %cst_60 : f32 to vector<16x1xf32>
    %205 = arith.addf %201, %204 : vector<16x1xf32>
    %206 = math.rsqrt %205 : vector<16x1xf32>
    %207 = vector.broadcast %206 : vector<16x1xf32> to vector<16x32xf32>
    %208 = arith.mulf %203, %207 : vector<16x32xf32>
    %209 = vector.broadcast %189 : vector<1x32xf32> to vector<16x32xf32>
    %210 = arith.mulf %208, %209 : vector<16x32xf32>
    %211 = vector.broadcast %190 : vector<1x32xf32> to vector<16x32xf32>
    %212 = arith.addf %210, %211 : vector<16x32xf32>
    %c104 = arith.constant 104 : index
    %c0_61 = arith.constant 0 : index
    %213 = vector.load %arg1[%c104, %c0_61] : memref<480x128xf32, #tpu.memory_space<vmem>>, vector<2x16xf32>
    %cst_62 = arith.constant dense<0.000000e+00> : vector<2x32xf32>
    %214 = tpu.matmul %213, %212, %cst_62 {dimension_numbers = #tpu.dot_dimension_numbers<[1], [0], [0], [1], [0, 0, 1, 1], [], []>} : vector<2x16xf32>, vector<16x32xf32>, vector<2x32xf32> -> vector<2x32xf32>
    %c112 = arith.constant 112 : index
    %c0_63 = arith.constant 0 : index
    %215 = vector.load %arg1[%c112, %c0_63] : memref<480x128xf32, #tpu.memory_space<vmem>>, vector<32x128xf32>
    %c108 = arith.constant 108 : index
    %c0_64 = arith.constant 0 : index
    %216 = vector.load %arg1[%c108, %c0_64] : memref<480x128xf32, #tpu.memory_space<vmem>>, vector<1x128xf32>
    %cst_65 = arith.constant dense<0.000000e+00> : vector<2x128xf32>
    %217 = tpu.matmul %214, %215, %cst_65 {dimension_numbers = #tpu.dot_dimension_numbers<[1], [0], [0], [1], [0, 0, 1, 1], [], []>} : vector<2x32xf32>, vector<32x128xf32>, vector<2x128xf32> -> vector<2x128xf32>
    %218 = vector.broadcast %216 : vector<1x128xf32> to vector<2x128xf32>
    %219 = arith.addf %217, %218 : vector<2x128xf32>
    %c0_66 = arith.constant 0 : index
    %c0_67 = arith.constant 0 : index
    %220 = vector.load %arg2[%c0_66, %c0_67] : memref<2x128xf32, #tpu.memory_space<vmem>>, vector<2x128xf32>
    tpu.vector_store %arg2[%c0_66, %c0_67], %219 {strides = array<i32>} : memref<2x128xf32, #tpu.memory_space<vmem>>, vector<2x128xf32>,
    return
  }
}

</mosaic_0001>

<llo_original>
// kernel: tpu_custom_call.1
$region0: #{tpu_custom_call.1}
  #allocation0 [shape = 'u32[]', space=smem, size = 0x4, offset = 0x4, fixed_abs, tag = 'smem constant byte address 0x4 - core index']
  #allocation1 [shape = 'u32[72,128]{1,0:T(1,128)}', space=vmem, size = 0x9000, scoped, tag = 'internal scratch']
  %s0 = inlined_call_operand.vmem [shape: f32[16,8], index: 0, kind: input, shape index: {}]
  %s1 = inlined_call_operand.hbm [shape: f32[480,128], index: 1, kind: input, shape index: {}]
  %s2 = inlined_call_operand.hbm [shape: f32[2,128], index: 2, kind: output, shape index: {}]
  %s3 = sld [smem:[#allocation0]]
  $region22: #{tpu_custom_call.1} parent=0
    _
  %s5 = ssub.s32 1, %s3
  %s6 = scalar_select 0, %s5, %s3
  $region1: #{tpu_custom_call.1} parent=0
    #allocation2 [shape = 'u8[245760]{0}', space=vmem, size = 0x3c000, scoped, tag = 'input window, operand 1, single buffered']
    #allocation3 [shape = 's32[1]{0}', space=sflag, size = 0x4, scoped, tag = 'scoped memory for tpu_custom_call.1']
    #allocation4 [shape = 's32[1]{0}', space=sflag, size = 0x4, scoped, tag = 'scoped memory for tpu_custom_call.1']
    #allocation5 [shape = 'u8[1024]{0}', space=vmem, size = 0x400, scoped, tag = 'output window, operand 0, single buffered']
    %7 = vsyncpa [#allocation3], 0
    %8 = vsyncpa [#allocation4], 0
    // Predicated region
    $region2: #{tpu_custom_call.1} parent=1 // pred_check
      _
    $region3: #{tpu_custom_call.1} parent=1 // pred_check_branch
      %10 = sbr.rel (0) target = $region5
    $region4: #{tpu_custom_call.1} parent=1 // pred_region
      _
    $region5: #{tpu_custom_call.1} parent=1 // pred_fallthru
      _
    // Predicated region
    $region6: #{tpu_custom_call.1} parent=1 // pred_check
      _
    $region7: #{tpu_custom_call.1} parent=1 // pred_check_branch
      %12 = sbr.rel (0) target = $region9
    $region8: #{tpu_custom_call.1} parent=1 // pred_region
      %14 = vsyncadd [#allocation3], 0
      %s15 = sshll.u32 %s1, 4
      %s16 = int_to_ptr.hbm [resolvable:$true] %s15
      %s17 = sshll.u32 [#allocation2], 4
      %s18 = int_to_ptr.vmem [resolvable:$true] %s17
      %23 = dma.hbm_to_vmem [thread:$0]  %s16, 7680, %s18, [#allocation3], 128, 128, 8
    $region9: #{tpu_custom_call.1} parent=1 // pred_fallthru
      _
    // Predicated region
    $region10: #{tpu_custom_call.1} parent=1 // pred_check
      _
    $region11: #{tpu_custom_call.1} parent=1 // pred_check_branch
      %25 = sbr.rel (0) target = $region13
    $region12: #{tpu_custom_call.1} parent=1 // pred_region
      %27 = dma.done [#allocation3], 7680
    $region13: #{tpu_custom_call.1} parent=1 // pred_fallthru
      _
    %v28 = vld [vmem:[%s0] sm:$0xff]
    %v29 = vld [vmem:[%s0 + $0x8] sm:$0xff]
    %v30 = vld [vmem:[#allocation2] sm:$0xff]
    %v31 = vld [vmem:[#allocation2 + $0x8] sm:$0xff]
    %v32 = vld [vmem:[#allocation2 + $0x10] sm:$0xff]
    %v33 = vld [vmem:[#allocation2 + $0x18] sm:$0xff]
    %v34 = vld [vmem:[#allocation2 + $0x20] sm:$0xff]
    %v35 = vld [vmem:[#allocation2 + $0x28] sm:$0xff]
    %v36 = vld [vmem:[#allocation2 + $0x30] sm:$0xff]
    %v37 = vld [vmem:[#allocation2 + $0x38] sm:$0xff]
    %v38 = vld [vmem:[#allocation2 + $0x40] sm:$0xff]
    %v39 = vld [vmem:[#allocation2 + $0x48] sm:$0xff]
    %v40 = vld [vmem:[#allocation2 + $0x50] sm:$0xff]
    %v41 = vld [vmem:[#allocation2 + $0x58] sm:$0xff]
    %v42 = vld [vmem:[#allocation2 + $0x60] sm:$0xff]
    %vm43 = vcmask 64512
    %v45 = vsel %vm43, %v28, 0
    %v48 = vsel %vm43, %v29, 0
    %50 = vmatpush.msra.mxu0 0.0
    %51 = vmatpush.msra.mxu0 0.0
    %52 = vmatpush.msra.mxu0 0.0
    %53 = vmatpush.msra.mxu0 0.0
    %54 = vmatpush.msra.mxu0 0.0
    %55 = vmatpush.msra.mxu0 0.0
    %56 = vmatpush.msra.mxu0 0.0
    %57 = vmatpush.msra.mxu0 0.0
    %58 = vmatpush.msra.mxu0 0.0
    %59 = vmatpush.msra.mxu0 0.0
    %60 = vmatpush.msra.mxu0 0.0
    %61 = vmatpush.msra.mxu0 0.0
    %62 = vmatpush.msra.mxu0 0.0
    %63 = vmatpush.msra.mxu0 0.0
    %64 = vmatpush.msra.mxu0 0.0
    %65 = vmatpush.msra.mxu0 %v30
    %66 = vmatmul.f32.gmra.mxu0 %v45
    %v67 = vpop.f32.mrf.mxu0
    %v68 = vadd.f32 %v31, %v67
    %69 = vmatmul.f32.gmra.mxu0 %v48
    %v70 = vpop.f32.mrf.mxu0
    %v71 = vadd.f32 %v32, %v70
    %72 = vdwg.mxu0
    %v73 = vld [vmem:[#allocation2 + $0x90] sm:$0xff]
    %v74 = vld [vmem:[#allocation2 + $0x98] sm:$0xff]
    %v75 = vld [vmem:[#allocation2 + $0xa0] sm:$0xff]
    %v76 = vld [vmem:[#allocation2 + $0xa8] sm:$0xff]
    %v77 = vld [vmem:[#allocation2 + $0xb0] sm:$0xff]
    %v78 = vld [vmem:[#allocation2 + $0xb8] sm:$0xff]
    %v79 = vld [vmem:[#allocation2 + $0xc0] sm:$0xff]
    %v80 = vld [vmem:[#allocation2 + $0xc8] sm:$0xff]
    %v81 = vld [vmem:[#allocation2 + $0xd0] sm:$0xff]
    %v82 = vld [vmem:[#allocation2 + $0xd8] sm:$0xff]
    %v83 = vld [vmem:[#allocation2 + $0xe0] sm:$0xff]
    %v84 = vld [vmem:[#allocation2 + $0xe8] sm:$0xff]
    %v85 = vld [vmem:[#allocation2 + $0xf0] sm:$0xff]
    %v86 = vld [vmem:[#allocation2 + $0xf8] sm:$0xff]
    %v87 = vld [vmem:[#allocation2 + $0x100] sm:$0xff]
    %v88 = vld [vmem:[#allocation2 + $0x108] sm:$0xff]
    %v89 = vld [vmem:[#allocation2 + $0x110] sm:$0xff]
    %v90 = vld [vmem:[#allocation2 + $0x118] sm:$0xff]
    %v91 = vld [vmem:[#allocation2 + $0x120] sm:$0xff]
    %v92 = vld [vmem:[#allocation2 + $0x128] sm:$0xff]
    %v93 = vld [vmem:[#allocation2 + $0x130] sm:$0xff]
    %v94 = vperm.slane %v93, 0
    %vm95 = vcmask 261120
    %v97 = vsel %vm95, %v68, 0
    %v100 = vsel %vm95, %v71, 0
    %102 = vmatpush.msra.mxu0 0.0
    %103 = vmatpush.msra.mxu0 0.0
    %104 = vmatpush.msra.mxu0 0.0
    %105 = vmatpush.msra.mxu0 0.0
    %106 = vmatpush.msra.mxu0 0.0
    %107 = vmatpush.msra.mxu0 0.0
    %108 = vmatpush.msra.mxu0 0.0
    %109 = vmatpush.msra.mxu0 0.0
    %110 = vmatpush.msra.mxu0 0.0
    %111 = vmatpush.msra.mxu0 0.0
    %112 = vmatpush.msra.mxu0 0.0
    %113 = vmatpush.msra.mxu0 0.0
    %114 = vmatpush.msra.mxu0 %v76
    %115 = vmatpush.msra.mxu0 %v75
    %116 = vmatpush.msra.mxu0 %v74
    %117 = vmatpush.msra.mxu0 %v73
    %118 = vmatmul.f32.gmra.mxu0 %v97
    %v119 = vpop.f32.mrf.mxu0
    %v120 = vadd.f32 %v94, %v119
    %121 = vmatmul.f32.gmra.mxu0 %v100
    %v122 = vpop.f32.mrf.mxu0
    %v123 = vadd.f32 %v94, %v122
    %124 = vdwg.mxu0
    %133 = vrot.lane.b32.xlu0 %v35, 32
    %v134 = vpop.permute.xlu0 %133
    %135 = vrot.lane.b32.xlu0 %v36, 32
    %v136 = vpop.permute.xlu0 %135
    %137 = vrot.lane.b32.xlu0 %v37, 32
    %v138 = vpop.permute.xlu0 %137
    %139 = vrot.lane.b32.xlu0 %v38, 32
    %v140 = vpop.permute.xlu0 %139
    %141 = vrot.lane.b32.xlu0 %v39, 32
    %v142 = vpop.permute.xlu0 %141
    %143 = vrot.lane.b32.xlu0 %v40, 32
    %v144 = vpop.permute.xlu0 %143
    %145 = vrot.lane.b32.xlu0 %v41, 32
    %v146 = vpop.permute.xlu0 %145
    %147 = vrot.lane.b32.xlu0 %v42, 32
    %v148 = vpop.permute.xlu0 %147
    %v157 = vmul.f32 %v120, %v134
    %v158 = vmul.f32 %v123, %v136
    %v159 = vmul.f32 %v120, %v138
    %v160 = vmul.f32 %v123, %v140
    %v161 = vmul.f32 %v120, %v142
    %v162 = vmul.f32 %v123, %v144
    %v163 = vmul.f32 %v120, %v146
    %v164 = vmul.f32 %v123, %v148
    %165 = vrot.lane.b32.xlu0 %v35, 64
    %v166 = vpop.permute.xlu0 %165
    %167 = vrot.lane.b32.xlu0 %v36, 64
    %v168 = vpop.permute.xlu0 %167
    %169 = vrot.lane.b32.xlu0 %v37, 64
    %v170 = vpop.permute.xlu0 %169
    %171 = vrot.lane.b32.xlu0 %v38, 64
    %v172 = vpop.permute.xlu0 %171
    %173 = vrot.lane.b32.xlu0 %v39, 64
    %v174 = vpop.permute.xlu0 %173
    %175 = vrot.lane.b32.xlu0 %v40, 64
    %v176 = vpop.permute.xlu0 %175
    %177 = vrot.lane.b32.xlu0 %v41, 64
    %v178 = vpop.permute.xlu0 %177
    %179 = vrot.lane.b32.xlu0 %v42, 64
    %v180 = vpop.permute.xlu0 %179
    %v189 = vmul.f32 %v120, %v166
    %v190 = vmul.f32 %v123, %v168
    %v191 = vmul.f32 %v120, %v170
    %v192 = vmul.f32 %v123, %v172
    %v193 = vmul.f32 %v120, %v174
    %v194 = vmul.f32 %v123, %v176
    %v195 = vmul.f32 %v120, %v178
    %v196 = vmul.f32 %v123, %v180
    %205 = vrot.lane.b32.xlu0 %v157, 96
    %v206 = vpop.permute.xlu0 %205
    %207 = vrot.lane.b32.xlu0 %v158, 96
    %v208 = vpop.permute.xlu0 %207
    %209 = vrot.lane.b32.xlu0 %v159, 96
    %v210 = vpop.permute.xlu0 %209
    %211 = vrot.lane.b32.xlu0 %v160, 96
    %v212 = vpop.permute.xlu0 %211
    %213 = vrot.lane.b32.xlu0 %v161, 96
    %v214 = vpop.permute.xlu0 %213
    %215 = vrot.lane.b32.xlu0 %v162, 96
    %v216 = vpop.permute.xlu0 %215
    %217 = vrot.lane.b32.xlu0 %v163, 96
    %v218 = vpop.permute.xlu0 %217
    %219 = vrot.lane.b32.xlu0 %v164, 96
    %v220 = vpop.permute.xlu0 %219
    %v222 = vsel %vm95, %v120, 0
    %v225 = vsel %vm95, %v123, 0
    %v227 = vsel %vm95, %v206, 0
    %v229 = vsel %vm95, %v208, 0
    %v231 = vsel %vm95, %v210, 0
    %v233 = vsel %vm95, %v212, 0
    %v235 = vsel %vm95, %v214, 0
    %v237 = vsel %vm95, %v216, 0
    %v239 = vsel %vm95, %v218, 0
    %v241 = vsel %vm95, %v220, 0
    %243 = vmatpush.xpose.msra.mxu0 0.0
    %244 = vmatpush.xpose.msra.mxu0 0.0
    %245 = vmatpush.xpose.msra.mxu0 0.0
    %246 = vmatpush.xpose.msra.mxu0 0.0
    %247 = vmatpush.xpose.msra.mxu0 0.0
    %248 = vmatpush.xpose.msra.mxu0 0.0
    %249 = vmatpush.xpose.msra.mxu0 0.0
    %250 = vmatpush.xpose.msra.mxu0 0.0
    %251 = vmatpush.xpose.msra.mxu0 %v241
    %252 = vmatpush.xpose.msra.mxu0 %v239
    %253 = vmatpush.xpose.msra.mxu0 %v237
    %254 = vmatpush.xpose.msra.mxu0 %v235
    %255 = vmatpush.xpose.msra.mxu0 %v233
    %256 = vmatpush.xpose.msra.mxu0 %v231
    %257 = vmatpush.xpose.msra.mxu0 %v229
    %258 = vmatpush.xpose.msra.mxu0 %v227
    %259 = vmatmul.f32.gmra.mxu0 %v222
    %v260 = vpop.f32.mrf.mxu0
    %v261 = vadd.f32 %v33, %v260
    %262 = vmatmul.f32.gmra.mxu0 %v225
    %v263 = vpop.f32.mrf.mxu0
    %v264 = vadd.f32 %v34, %v263
    %265 = vdwg.mxu0
    %vm266 = vcmask 523264
    %v267 = vsel %vm266, %v261, -inf
    %268 = vmax.xlane.f32.xlu0 %v267
    %v269 = vpop.xlane.xlu0 %268
    %v270 = vsel %vm266, %v264, -inf
    %271 = vmax.xlane.f32.xlu0 %v270
    %v272 = vpop.xlane.xlu0 %271
    %v273 = vsub.f32 %v261, %v269
    %v274 = vsub.f32 %v264, %v272
    %v275 = vmul.f32 %v273, 1.442695
    %v276 = vpow.pop %v275
    %v277 = vmul.f32 %v274, 1.442695
    %v278 = vpow.pop %v277
    %287 = vrot.lane.b32.xlu0 %v189, 64
    %v288 = vpop.permute.xlu0 %287
    %289 = vrot.lane.b32.xlu0 %v190, 64
    %v290 = vpop.permute.xlu0 %289
    %291 = vrot.lane.b32.xlu0 %v191, 64
    %v292 = vpop.permute.xlu0 %291
    %293 = vrot.lane.b32.xlu0 %v192, 64
    %v294 = vpop.permute.xlu0 %293
    %295 = vrot.lane.b32.xlu0 %v193, 64
    %v296 = vpop.permute.xlu0 %295
    %297 = vrot.lane.b32.xlu0 %v194, 64
    %v298 = vpop.permute.xlu0 %297
    %299 = vrot.lane.b32.xlu0 %v195, 64
    %v300 = vpop.permute.xlu0 %299
    %301 = vrot.lane.b32.xlu0 %v196, 64
    %v302 = vpop.permute.xlu0 %301
    %v312 = vsel %vm266, %v276, 0
    %v315 = vsel %vm266, %v278, 0
    %317 = vmatpush.msra.mxu0 0.0
    %318 = vmatpush.msra.mxu0 0.0
    %319 = vmatpush.msra.mxu0 0.0
    %320 = vmatpush.msra.mxu0 0.0
    %321 = vmatpush.msra.mxu0 0.0
    %322 = vmatpush.msra.mxu0 0.0
    %323 = vmatpush.msra.mxu0 0.0
    %324 = vmatpush.msra.mxu0 0.0
    %325 = vmatpush.msra.mxu0 %v302
    %326 = vmatpush.msra.mxu0 %v300
    %327 = vmatpush.msra.mxu0 %v298
    %328 = vmatpush.msra.mxu0 %v296
    %329 = vmatpush.msra.mxu0 %v294
    %330 = vmatpush.msra.mxu0 %v292
    %331 = vmatpush.msra.mxu0 %v290
    %332 = vmatpush.msra.mxu0 %v288
    %333 = vmatmul.f32.gmra.mxu0 %v312
    %v334 = vpop.f32.mrf.mxu0
    %v335 = vadd.f32 0.0, %v334
    %336 = vmatmul.f32.gmra.mxu0 %v315
    %v337 = vpop.f32.mrf.mxu0
    %v338 = vadd.f32 0.0, %v337
    %339 = vdwg.mxu0
    %340 = vmatpush.msra.mxu0 0.0
    %341 = vmatpush.msra.mxu0 0.0
    %342 = vmatpush.msra.mxu0 0.0
    %343 = vmatpush.msra.mxu0 0.0
    %344 = vmatpush.msra.mxu0 0.0
    %345 = vmatpush.msra.mxu0 0.0
    %346 = vmatpush.msra.mxu0 0.0
    %347 = vmatpush.msra.mxu0 0.0
    %348 = vmatpush.msra.mxu0 %v42
    %349 = vmatpush.msra.mxu0 %v41
    %350 = vmatpush.msra.mxu0 %v40
    %351 = vmatpush.msra.mxu0 %v39
    %352 = vmatpush.msra.mxu0 %v38
    %353 = vmatpush.msra.mxu0 %v37
    %354 = vmatpush.msra.mxu0 %v36
    %355 = vmatpush.msra.mxu0 %v35
    %356 = vmatmul.f32.gmra.mxu0 %v312
    %v357 = vpop.f32.mrf.mxu0
    %v358 = vadd.f32 0.0, %v357
    %359 = vmatmul.f32.gmra.mxu0 %v315
    %v360 = vpop.f32.mrf.mxu0
    %v361 = vadd.f32 0.0, %v360
    %362 = vdwg.mxu0
    %v363 = vrcp.pop %v358
    %v364 = vrcp.pop %v361
    %v365 = vmul.f32 %v335, %v363
    %v366 = vmul.f32 %v338, %v364
    %v367 = vperm.slane %v93, 1
    %v369 = vsel %vm95, %v365, 0
    %v372 = vsel %vm95, %v366, 0
    %374 = vmatpush.msra.mxu0 0.0
    %375 = vmatpush.msra.mxu0 0.0
    %376 = vmatpush.msra.mxu0 0.0
    %377 = vmatpush.msra.mxu0 0.0
    %378 = vmatpush.msra.mxu0 0.0
    %379 = vmatpush.msra.mxu0 0.0
    %380 = vmatpush.msra.mxu0 0.0
    %381 = vmatpush.msra.mxu0 0.0
    %382 = vmatpush.msra.mxu0 0.0
    %383 = vmatpush.msra.mxu0 0.0
    %384 = vmatpush.msra.mxu0 0.0
    %385 = vmatpush.msra.mxu0 0.0
    %386 = vmatpush.msra.mxu0 %v80
    %387 = vmatpush.msra.mxu0 %v79
    %388 = vmatpush.msra.mxu0 %v78
    %389 = vmatpush.msra.mxu0 %v77
    %390 = vmatmul.f32.gmra.mxu0 %v369
    %v391 = vpop.f32.mrf.mxu0
    %v392 = vadd.f32 %v367, %v391
    %393 = vmatmul.f32.gmra.mxu0 %v372
    %v394 = vpop.f32.mrf.mxu0
    %v395 = vadd.f32 %v367, %v394
    %396 = vdwg.mxu0
    %v397 = vadd.f32 %v68, %v392
    %v398 = vadd.f32 %v71, %v395
    %v399 = vsel %vm95, %v397, 0.0
    %400 = vadd.xlane.f32.xlu0 %v399
    %v401 = vpop.xlane.xlu0 %400
    %v402 = vsel %vm95, %v398, 0.0
    %403 = vadd.xlane.f32.xlu0 %v402
    %v404 = vpop.xlane.xlu0 %403
    %v405 = vrcp.pop 32.0
    %v406 = vmul.f32 32.0, %v405
    %v407 = vsub.f32 1.0, %v406
    %v408 = vmul.f32 %v405, %v407
    %v409 = vadd.f32 %v405, %v408
    %vm410 = vweird.f32 %v405
    %v411 = vsel %vm410, %v405, %v409
    %v412 = vmul.f32 %v401, %v411
    %v413 = vmul.f32 %v404, %v411
    %v414 = vmul.f32 %v397, %v397
    %v415 = vmul.f32 %v398, %v398
    %v416 = vsel %vm95, %v414, 0.0
    %417 = vadd.xlane.f32.xlu0 %v416
    %v418 = vpop.xlane.xlu0 %417
    %v419 = vsel %vm95, %v415, 0.0
    %420 = vadd.xlane.f32.xlu0 %v419
    %v421 = vpop.xlane.xlu0 %420
    %v422 = vmul.f32 %v418, %v411
    %v423 = vmul.f32 %v421, %v411
    %v424 = vmul.f32 %v412, %v412
    %v425 = vmul.f32 %v413, %v413
    %v426 = vsub.f32 %v422, %v424
    %v427 = vsub.f32 %v423, %v425
    %v428 = vsub.f32 %v397, %v412
    %v429 = vsub.f32 %v398, %v413
    %v430 = vadd.f32 %v426, 1e-05
    %v431 = vadd.f32 %v427, 1e-05
    %v432 = vrsqrt.pop %v430
    %v433 = vmul.f32 %v432, %v430
    %v434 = vmul.f32 %v433, %v432
    %v435 = vmul.f32 0.5, %v434
    %v436 = vsub.f32 1.5, %v435
    %v437 = vmul.f32 %v432, %v436
    %vm438 = vweird.f32 %v430
    %vm439 = vweird.f32 %v432
    %vm440 = vmor %vm438, %vm439
    %v441 = vsel %vm440, %v432, %v437
    %v442 = vrsqrt.pop %v431
    %v443 = vmul.f32 %v442, %v431
    %v444 = vmul.f32 %v443, %v442
    %v445 = vmul.f32 0.5, %v444
    %v446 = vsub.f32 1.5, %v445
    %v447 = vmul.f32 %v442, %v446
    %vm448 = vweird.f32 %v431
    %vm449 = vweird.f32 %v442
    %vm450 = vmor %vm448, %vm449
    %v451 = vsel %vm450, %v442, %v447
    %v452 = vmul.f32 %v428, %v441
    %v453 = vmul.f32 %v429, %v451
    %v454 = vperm.slane %v93, 2
    %v455 = vmul.f32 %v452, %v454
    %v456 = vmul.f32 %v453, %v454
    %v457 = vperm.slane %v93, 3
    %v458 = vadd.f32 %v455, %v457
    %v459 = vadd.f32 %v456, %v457
    %v460 = vperm.slane %v93, 4
    %v462 = vsel %vm95, %v458, 0
    %v465 = vsel %vm95, %v459, 0
    %467 = vmatpush.msra.mxu0 0.0
    %468 = vmatpush.msra.mxu0 0.0
    %469 = vmatpush.msra.mxu0 0.0
    %470 = vmatpush.msra.mxu0 0.0
    %471 = vmatpush.msra.mxu0 0.0
    %472 = vmatpush.msra.mxu0 0.0
    %473 = vmatpush.msra.mxu0 0.0
    %474 = vmatpush.msra.mxu0 0.0
    %475 = vmatpush.msra.mxu0 0.0
    %476 = vmatpush.msra.mxu0 0.0
    %477 = vmatpush.msra.mxu0 0.0
    %478 = vmatpush.msra.mxu0 0.0
    %479 = vmatpush.msra.mxu0 %v84
    %480 = vmatpush.msra.mxu0 %v83
    %481 = vmatpush.msra.mxu0 %v82
    %482 = vmatpush.msra.mxu0 %v81
    %483 = vmatmul.f32.gmra.mxu0 %v462
    %v484 = vpop.f32.mrf.mxu0
    %v485 = vadd.f32 %v460, %v484
    %486 = vmatmul.f32.gmra.mxu0 %v465
    %v487 = vpop.f32.mrf.mxu0
    %v488 = vadd.f32 %v460, %v487
    %489 = vdwg.mxu0
    %v490 = vmax.f32 %v485, 0.0
    %v491 = vmax.f32 %v488, 0.0
    %v492 = vperm.slane %v93, 5
    %v494 = vsel %vm266, %v490, 0
    %v497 = vsel %vm266, %v491, 0
    %499 = vmatpush.msra.mxu0 0.0
    %500 = vmatpush.msra.mxu0 0.0
    %501 = vmatpush.msra.mxu0 0.0
    %502 = vmatpush.msra.mxu0 0.0
    %503 = vmatpush.msra.mxu0 0.0
    %504 = vmatpush.msra.mxu0 0.0
    %505 = vmatpush.msra.mxu0 0.0
    %506 = vmatpush.msra.mxu0 0.0
    %507 = vmatpush.msra.mxu0 %v92
    %508 = vmatpush.msra.mxu0 %v91
    %509 = vmatpush.msra.mxu0 %v90
    %510 = vmatpush.msra.mxu0 %v89
    %511 = vmatpush.msra.mxu0 %v88
    %512 = vmatpush.msra.mxu0 %v87
    %513 = vmatpush.msra.mxu0 %v86
    %514 = vmatpush.msra.mxu0 %v85
    %515 = vmatmul.f32.gmra.mxu0 %v494
    %v516 = vpop.f32.mrf.mxu0
    %v517 = vadd.f32 %v492, %v516
    %518 = vmatmul.f32.gmra.mxu0 %v497
    %v519 = vpop.f32.mrf.mxu0
    %v520 = vadd.f32 %v492, %v519
    %521 = vdwg.mxu0
    %v522 = vadd.f32 %v458, %v517
    %v523 = vadd.f32 %v459, %v520
    %v524 = vsel %vm95, %v522, 0.0
    %525 = vadd.xlane.f32.xlu0 %v524
    %v526 = vpop.xlane.xlu0 %525
    %v527 = vsel %vm95, %v523, 0.0
    %528 = vadd.xlane.f32.xlu0 %v527
    %v529 = vpop.xlane.xlu0 %528
    %v530 = vmul.f32 %v526, %v411
    %v531 = vmul.f32 %v529, %v411
    %v532 = vmul.f32 %v522, %v522
    %v533 = vmul.f32 %v523, %v523
    %v534 = vsel %vm95, %v532, 0.0
    %535 = vadd.xlane.f32.xlu0 %v534
    %v536 = vpop.xlane.xlu0 %535
    %v537 = vsel %vm95, %v533, 0.0
    %538 = vadd.xlane.f32.xlu0 %v537
    %v539 = vpop.xlane.xlu0 %538
    %v540 = vmul.f32 %v536, %v411
    %v541 = vmul.f32 %v539, %v411
    %v542 = vmul.f32 %v530, %v530
    %v543 = vmul.f32 %v531, %v531
    %v544 = vsub.f32 %v540, %v542
    %v545 = vsub.f32 %v541, %v543
    %v546 = vsub.f32 %v522, %v530
    %v547 = vsub.f32 %v523, %v531
    %v548 = vadd.f32 %v544, 1e-05
    %v549 = vadd.f32 %v545, 1e-05
    %v550 = vrsqrt.pop %v548
    %v551 = vmul.f32 %v550, %v548
    %v552 = vmul.f32 %v551, %v550
    %v553 = vmul.f32 0.5, %v552
    %v554 = vsub.f32 1.5, %v553
    %v555 = vmul.f32 %v550, %v554
    %vm556 = vweird.f32 %v548
    %vm557 = vweird.f32 %v550
    %vm558 = vmor %vm556, %vm557
    %v559 = vsel %vm558, %v550, %v555
    %v560 = vrsqrt.pop %v549
    %v561 = vmul.f32 %v560, %v549
    %v562 = vmul.f32 %v561, %v560
    %v563 = vmul.f32 0.5, %v562
    %v564 = vsub.f32 1.5, %v563
    %v565 = vmul.f32 %v560, %v564
    %vm566 = vweird.f32 %v549
    %vm567 = vweird.f32 %v560
    %vm568 = vmor %vm566, %vm567
    %v569 = vsel %vm568, %v560, %v565
    %v570 = vmul.f32 %v546, %v559
    %v571 = vmul.f32 %v547, %v569
    %v572 = vperm.slane %v93, 6
    %v573 = vmul.f32 %v570, %v572
    %v574 = vmul.f32 %v571, %v572
    %v575 = vperm.slane %v93, 7
    %v576 = vadd.f32 %v573, %v575
    %v577 = vadd.f32 %v574, %v575
    %v578 = vld [vmem:[#allocation2 + $0x138] sm:$0xff]
    %v579 = vld [vmem:[#allocation2 + $0x140] sm:$0xff]
    %v580 = vld [vmem:[#allocation2 + $0x148] sm:$0xff]
    %v581 = vld [vmem:[#allocation2 + $0x150] sm:$0xff]
    %v582 = vld [vmem:[#allocation2 + $0x158] sm:$0xff]
    %v583 = vld [vmem:[#allocation2 + $0x160] sm:$0xff]
    %v584 = vld [vmem:[#allocation2 + $0x168] sm:$0xff]
    %v585 = vld [vmem:[#allocation2 + $0x170] sm:$0xff]
    %v586 = vld [vmem:[#allocation2 + $0x178] sm:$0xff]
    %v587 = vld [vmem:[#allocation2 + $0x180] sm:$0xff]
    %v588 = vld [vmem:[#allocation2 + $0x188] sm:$0xff]
    %v589 = vld [vmem:[#allocation2 + $0x190] sm:$0xff]
    %v590 = vld [vmem:[#allocation2 + $0x198] sm:$0xff]
    %v591 = vld [vmem:[#allocation2 + $0x1a0] sm:$0xff]
    %v592 = vld [vmem:[#allocation2 + $0x1a8] sm:$0xff]
    %v593 = vld [vmem:[#allocation2 + $0x1b0] sm:$0xff]
    %v594 = vld [vmem:[#allocation2 + $0x1b8] sm:$0xff]
    %v595 = vld [vmem:[#allocation2 + $0x1c0] sm:$0xff]
    %v596 = vld [vmem:[#allocation2 + $0x1c8] sm:$0xff]
    %v597 = vld [vmem:[#allocation2 + $0x1d0] sm:$0xff]
    %v598 = vld [vmem:[#allocation2 + $0x1d8] sm:$0xff]
    %v599 = vperm.slane %v598, 0
    %v601 = vsel %vm95, %v576, 0
    %v604 = vsel %vm95, %v577, 0
    %606 = vmatpush.msra.mxu0 0.0
    %607 = vmatpush.msra.mxu0 0.0
    %608 = vmatpush.msra.mxu0 0.0
    %609 = vmatpush.msra.mxu0 0.0
    %610 = vmatpush.msra.mxu0 0.0
    %611 = vmatpush.msra.mxu0 0.0
    %612 = vmatpush.msra.mxu0 0.0
    %613 = vmatpush.msra.mxu0 0.0
    %614 = vmatpush.msra.mxu0 0.0
    %615 = vmatpush.msra.mxu0 0.0
    %616 = vmatpush.msra.mxu0 0.0
    %617 = vmatpush.msra.mxu0 0.0
    %618 = vmatpush.msra.mxu0 %v581
    %619 = vmatpush.msra.mxu0 %v580
    %620 = vmatpush.msra.mxu0 %v579
    %621 = vmatpush.msra.mxu0 %v578
    %622 = vmatmul.f32.gmra.mxu0 %v601
    %v623 = vpop.f32.mrf.mxu0
    %v624 = vadd.f32 %v599, %v623
    %625 = vmatmul.f32.gmra.mxu0 %v604
    %v626 = vpop.f32.mrf.mxu0
    %v627 = vadd.f32 %v599, %v626
    %628 = vdwg.mxu0
    %v629 = vmul.f32 %v624, %v134
    %v630 = vmul.f32 %v627, %v136
    %v631 = vmul.f32 %v624, %v138
    %v632 = vmul.f32 %v627, %v140
    %v633 = vmul.f32 %v624, %v142
    %v634 = vmul.f32 %v627, %v144
    %v635 = vmul.f32 %v624, %v146
    %v636 = vmul.f32 %v627, %v148
    %v637 = vmul.f32 %v624, %v166
    %v638 = vmul.f32 %v627, %v168
    %v639 = vmul.f32 %v624, %v170
    %v640 = vmul.f32 %v627, %v172
    %v641 = vmul.f32 %v624, %v174
    %v642 = vmul.f32 %v627, %v176
    %v643 = vmul.f32 %v624, %v178
    %v644 = vmul.f32 %v627, %v180
    %653 = vrot.lane.b32.xlu0 %v629, 96
    %v654 = vpop.permute.xlu0 %653
    %655 = vrot.lane.b32.xlu0 %v630, 96
    %v656 = vpop.permute.xlu0 %655
    %657 = vrot.lane.b32.xlu0 %v631, 96
    %v658 = vpop.permute.xlu0 %657
    %659 = vrot.lane.b32.xlu0 %v632, 96
    %v660 = vpop.permute.xlu0 %659
    %661 = vrot.lane.b32.xlu0 %v633, 96
    %v662 = vpop.permute.xlu0 %661
    %663 = vrot.lane.b32.xlu0 %v634, 96
    %v664 = vpop.permute.xlu0 %663
    %665 = vrot.lane.b32.xlu0 %v635, 96
    %v666 = vpop.permute.xlu0 %665
    %667 = vrot.lane.b32.xlu0 %v636, 96
    %v668 = vpop.permute.xlu0 %667
    %v670 = vsel %vm95, %v624, 0
    %v673 = vsel %vm95, %v627, 0
    %v675 = vsel %vm95, %v654, 0
    %v677 = vsel %vm95, %v656, 0
    %v679 = vsel %vm95, %v658, 0
    %v681 = vsel %vm95, %v660, 0
    %v683 = vsel %vm95, %v662, 0
    %v685 = vsel %vm95, %v664, 0
    %v687 = vsel %vm95, %v666, 0
    %v689 = vsel %vm95, %v668, 0
    %691 = vmatpush.xpose.msra.mxu0 0.0
    %692 = vmatpush.xpose.msra.mxu0 0.0
    %693 = vmatpush.xpose.msra.mxu0 0.0
    %694 = vmatpush.xpose.msra.mxu0 0.0
    %695 = vmatpush.xpose.msra.mxu0 0.0
    %696 = vmatpush.xpose.msra.mxu0 0.0
    %697 = vmatpush.xpose.msra.mxu0 0.0
    %698 = vmatpush.xpose.msra.mxu0 0.0
    %699 = vmatpush.xpose.msra.mxu0 %v689
    %700 = vmatpush.xpose.msra.mxu0 %v687
    %701 = vmatpush.xpose.msra.mxu0 %v685
    %702 = vmatpush.xpose.msra.mxu0 %v683
    %703 = vmatpush.xpose.msra.mxu0 %v681
    %704 = vmatpush.xpose.msra.mxu0 %v679
    %705 = vmatpush.xpose.msra.mxu0 %v677
    %706 = vmatpush.xpose.msra.mxu0 %v675
    %707 = vmatmul.f32.gmra.mxu0 %v670
    %v708 = vpop.f32.mrf.mxu0
    %v709 = vadd.f32 %v33, %v708
    %710 = vmatmul.f32.gmra.mxu0 %v673
    %v711 = vpop.f32.mrf.mxu0
    %v712 = vadd.f32 %v34, %v711
    %713 = vdwg.mxu0
    %v714 = vsel %vm266, %v709, -inf
    %715 = vmax.xlane.f32.xlu0 %v714
    %v716 = vpop.xlane.xlu0 %715
    %v717 = vsel %vm266, %v712, -inf
    %718 = vmax.xlane.f32.xlu0 %v717
    %v719 = vpop.xlane.xlu0 %718
    %v720 = vsub.f32 %v709, %v716
    %v721 = vsub.f32 %v712, %v719
    %v722 = vmul.f32 %v720, 1.442695
    %v723 = vpow.pop %v722
    %v724 = vmul.f32 %v721, 1.442695
    %v725 = vpow.pop %v724
    %734 = vrot.lane.b32.xlu0 %v637, 64
    %v735 = vpop.permute.xlu0 %734
    %736 = vrot.lane.b32.xlu0 %v638, 64
    %v737 = vpop.permute.xlu0 %736
    %738 = vrot.lane.b32.xlu0 %v639, 64
    %v739 = vpop.permute.xlu0 %738
    %740 = vrot.lane.b32.xlu0 %v640, 64
    %v741 = vpop.permute.xlu0 %740
    %742 = vrot.lane.b32.xlu0 %v641, 64
    %v743 = vpop.permute.xlu0 %742
    %744 = vrot.lane.b32.xlu0 %v642, 64
    %v745 = vpop.permute.xlu0 %744
    %746 = vrot.lane.b32.xlu0 %v643, 64
    %v747 = vpop.permute.xlu0 %746
    %748 = vrot.lane.b32.xlu0 %v644, 64
    %v749 = vpop.permute.xlu0 %748
    %v759 = vsel %vm266, %v723, 0
    %v762 = vsel %vm266, %v725, 0
    %764 = vmatpush.msra.mxu0 0.0
    %765 = vmatpush.msra.mxu0 0.0
    %766 = vmatpush.msra.mxu0 0.0
    %767 = vmatpush.msra.mxu0 0.0
    %768 = vmatpush.msra.mxu0 0.0
    %769 = vmatpush.msra.mxu0 0.0
    %770 = vmatpush.msra.mxu0 0.0
    %771 = vmatpush.msra.mxu0 0.0
    %772 = vmatpush.msra.mxu0 %v749
    %773 = vmatpush.msra.mxu0 %v747
    %774 = vmatpush.msra.mxu0 %v745
    %775 = vmatpush.msra.mxu0 %v743
    %776 = vmatpush.msra.mxu0 %v741
    %777 = vmatpush.msra.mxu0 %v739
    %778 = vmatpush.msra.mxu0 %v737
    %779 = vmatpush.msra.mxu0 %v735
    %780 = vmatmul.f32.gmra.mxu0 %v759
    %v781 = vpop.f32.mrf.mxu0
    %v782 = vadd.f32 0.0, %v781
    %783 = vmatmul.f32.gmra.mxu0 %v762
    %v784 = vpop.f32.mrf.mxu0
    %v785 = vadd.f32 0.0, %v784
    %786 = vdwg.mxu0
    %787 = vmatpush.msra.mxu0 0.0
    %788 = vmatpush.msra.mxu0 0.0
    %789 = vmatpush.msra.mxu0 0.0
    %790 = vmatpush.msra.mxu0 0.0
    %791 = vmatpush.msra.mxu0 0.0
    %792 = vmatpush.msra.mxu0 0.0
    %793 = vmatpush.msra.mxu0 0.0
    %794 = vmatpush.msra.mxu0 0.0
    %795 = vmatpush.msra.mxu0 %v42
    %796 = vmatpush.msra.mxu0 %v41
    %797 = vmatpush.msra.mxu0 %v40
    %798 = vmatpush.msra.mxu0 %v39
    %799 = vmatpush.msra.mxu0 %v38
    %800 = vmatpush.msra.mxu0 %v37
    %801 = vmatpush.msra.mxu0 %v36
    %802 = vmatpush.msra.mxu0 %v35
    %803 = vmatmul.f32.gmra.mxu0 %v759
    %v804 = vpop.f32.mrf.mxu0
    %v805 = vadd.f32 0.0, %v804
    %806 = vmatmul.f32.gmra.mxu0 %v762
    %v807 = vpop.f32.mrf.mxu0
    %v808 = vadd.f32 0.0, %v807
    %809 = vdwg.mxu0
    %v810 = vrcp.pop %v805
    %v811 = vrcp.pop %v808
    %v812 = vmul.f32 %v782, %v810
    %v813 = vmul.f32 %v785, %v811
    %v814 = vperm.slane %v598, 1
    %v816 = vsel %vm95, %v812, 0
    %v819 = vsel %vm95, %v813, 0
    %821 = vmatpush.msra.mxu0 0.0
    %822 = vmatpush.msra.mxu0 0.0
    %823 = vmatpush.msra.mxu0 0.0
    %824 = vmatpush.msra.mxu0 0.0
    %825 = vmatpush.msra.mxu0 0.0
    %826 = vmatpush.msra.mxu0 0.0
    %827 = vmatpush.msra.mxu0 0.0
    %828 = vmatpush.msra.mxu0 0.0
    %829 = vmatpush.msra.mxu0 0.0
    %830 = vmatpush.msra.mxu0 0.0
    %831 = vmatpush.msra.mxu0 0.0
    %832 = vmatpush.msra.mxu0 0.0
    %833 = vmatpush.msra.mxu0 %v585
    %834 = vmatpush.msra.mxu0 %v584
    %835 = vmatpush.msra.mxu0 %v583
    %836 = vmatpush.msra.mxu0 %v582
    %837 = vmatmul.f32.gmra.mxu0 %v816
    %v838 = vpop.f32.mrf.mxu0
    %v839 = vadd.f32 %v814, %v838
    %840 = vmatmul.f32.gmra.mxu0 %v819
    %v841 = vpop.f32.mrf.mxu0
    %v842 = vadd.f32 %v814, %v841
    %843 = vdwg.mxu0
    %v844 = vadd.f32 %v576, %v839
    %v845 = vadd.f32 %v577, %v842
    %v846 = vsel %vm95, %v844, 0.0
    %847 = vadd.xlane.f32.xlu0 %v846
    %v848 = vpop.xlane.xlu0 %847
    %v849 = vsel %vm95, %v845, 0.0
    %850 = vadd.xlane.f32.xlu0 %v849
    %v851 = vpop.xlane.xlu0 %850
    %v852 = vmul.f32 %v848, %v411
    %v853 = vmul.f32 %v851, %v411
    %v854 = vmul.f32 %v844, %v844
    %v855 = vmul.f32 %v845, %v845
    %v856 = vsel %vm95, %v854, 0.0
    %857 = vadd.xlane.f32.xlu0 %v856
    %v858 = vpop.xlane.xlu0 %857
    %v859 = vsel %vm95, %v855, 0.0
    %860 = vadd.xlane.f32.xlu0 %v859
    %v861 = vpop.xlane.xlu0 %860
    %v862 = vmul.f32 %v858, %v411
    %v863 = vmul.f32 %v861, %v411
    %v864 = vmul.f32 %v852, %v852
    %v865 = vmul.f32 %v853, %v853
    %v866 = vsub.f32 %v862, %v864
    %v867 = vsub.f32 %v863, %v865
    %v868 = vsub.f32 %v844, %v852
    %v869 = vsub.f32 %v845, %v853
    %v870 = vadd.f32 %v866, 1e-05
    %v871 = vadd.f32 %v867, 1e-05
    %v872 = vrsqrt.pop %v870
    %v873 = vmul.f32 %v872, %v870
    %v874 = vmul.f32 %v873, %v872
    %v875 = vmul.f32 0.5, %v874
    %v876 = vsub.f32 1.5, %v875
    %v877 = vmul.f32 %v872, %v876
    %vm878 = vweird.f32 %v870
    %vm879 = vweird.f32 %v872
    %vm880 = vmor %vm878, %vm879
    %v881 = vsel %vm880, %v872, %v877
    %v882 = vrsqrt.pop %v871
    %v883 = vmul.f32 %v882, %v871
    %v884 = vmul.f32 %v883, %v882
    %v885 = vmul.f32 0.5, %v884
    %v886 = vsub.f32 1.5, %v885
    %v887 = vmul.f32 %v882, %v886
    %vm888 = vweird.f32 %v871
    %vm889 = vweird.f32 %v882
    %vm890 = vmor %vm888, %vm889
    %v891 = vsel %vm890, %v882, %v887
    %v892 = vmul.f32 %v868, %v881
    %v893 = vmul.f32 %v869, %v891
    %v894 = vperm.slane %v598, 2
    %v895 = vmul.f32 %v892, %v894
    %v896 = vmul.f32 %v893, %v894
    %v897 = vperm.slane %v598, 3
    %v898 = vadd.f32 %v895, %v897
    %v899 = vadd.f32 %v896, %v897
    %v900 = vperm.slane %v598, 4
    %v902 = vsel %vm95, %v898, 0
    %v905 = vsel %vm95, %v899, 0
    %907 = vmatpush.msra.mxu0 0.0
    %908 = vmatpush.msra.mxu0 0.0
    %909 = vmatpush.msra.mxu0 0.0
    %910 = vmatpush.msra.mxu0 0.0
    %911 = vmatpush.msra.mxu0 0.0
    %912 = vmatpush.msra.mxu0 0.0
    %913 = vmatpush.msra.mxu0 0.0
    %914 = vmatpush.msra.mxu0 0.0
    %915 = vmatpush.msra.mxu0 0.0
    %916 = vmatpush.msra.mxu0 0.0
    %917 = vmatpush.msra.mxu0 0.0
    %918 = vmatpush.msra.mxu0 0.0
    %919 = vmatpush.msra.mxu0 %v589
    %920 = vmatpush.msra.mxu0 %v588
    %921 = vmatpush.msra.mxu0 %v587
    %922 = vmatpush.msra.mxu0 %v586
    %923 = vmatmul.f32.gmra.mxu0 %v902
    %v924 = vpop.f32.mrf.mxu0
    %v925 = vadd.f32 %v900, %v924
    %926 = vmatmul.f32.gmra.mxu0 %v905
    %v927 = vpop.f32.mrf.mxu0
    %v928 = vadd.f32 %v900, %v927
    %929 = vdwg.mxu0
    %v930 = vmax.f32 %v925, 0.0
    %v931 = vmax.f32 %v928, 0.0
    %v932 = vperm.slane %v598, 5
    %v934 = vsel %vm266, %v930, 0
    %v937 = vsel %vm266, %v931, 0
    %939 = vmatpush.msra.mxu0 0.0
    %940 = vmatpush.msra.mxu0 0.0
    %941 = vmatpush.msra.mxu0 0.0
    %942 = vmatpush.msra.mxu0 0.0
    %943 = vmatpush.msra.mxu0 0.0
    %944 = vmatpush.msra.mxu0 0.0
    %945 = vmatpush.msra.mxu0 0.0
    %946 = vmatpush.msra.mxu0 0.0
    %947 = vmatpush.msra.mxu0 %v597
    %948 = vmatpush.msra.mxu0 %v596
    %949 = vmatpush.msra.mxu0 %v595
    %950 = vmatpush.msra.mxu0 %v594
    %951 = vmatpush.msra.mxu0 %v593
    %952 = vmatpush.msra.mxu0 %v592
    %953 = vmatpush.msra.mxu0 %v591
    %954 = vmatpush.msra.mxu0 %v590
    %955 = vmatmul.f32.gmra.mxu0 %v934
    %v956 = vpop.f32.mrf.mxu0
    %v957 = vadd.f32 %v932, %v956
    %958 = vmatmul.f32.gmra.mxu0 %v937
    %v959 = vpop.f32.mrf.mxu0
    %v960 = vadd.f32 %v932, %v959
    %961 = vdwg.mxu0
    %v962 = vadd.f32 %v898, %v957
    %v963 = vadd.f32 %v899, %v960
    %v964 = vsel %vm95, %v962, 0.0
    %965 = vadd.xlane.f32.xlu0 %v964
    %v966 = vpop.xlane.xlu0 %965
    %v967 = vsel %vm95, %v963, 0.0
    %968 = vadd.xlane.f32.xlu0 %v967
    %v969 = vpop.xlane.xlu0 %968
    %v970 = vmul.f32 %v966, %v411
    %v971 = vmul.f32 %v969, %v411
    %v972 = vmul.f32 %v962, %v962
    %v973 = vmul.f32 %v963, %v963
    %v974 = vsel %vm95, %v972, 0.0
    %975 = vadd.xlane.f32.xlu0 %v974
    %v976 = vpop.xlane.xlu0 %975
    %v977 = vsel %vm95, %v973, 0.0
    %978 = vadd.xlane.f32.xlu0 %v977
    %v979 = vpop.xlane.xlu0 %978
    %v980 = vmul.f32 %v976, %v411
    %v981 = vmul.f32 %v979, %v411
    %v982 = vmul.f32 %v970, %v970
    %v983 = vmul.f32 %v971, %v971
    %v984 = vsub.f32 %v980, %v982
    %v985 = vsub.f32 %v981, %v983
    %v986 = vsub.f32 %v962, %v970
    %v987 = vsub.f32 %v963, %v971
    %v988 = vadd.f32 %v984, 1e-05
    %v989 = vadd.f32 %v985, 1e-05
    %v990 = vrsqrt.pop %v988
    %v991 = vmul.f32 %v990, %v988
    %v992 = vmul.f32 %v991, %v990
    %v993 = vmul.f32 0.5, %v992
    %v994 = vsub.f32 1.5, %v993
    %v995 = vmul.f32 %v990, %v994
    %vm996 = vweird.f32 %v988
    %vm997 = vweird.f32 %v990
    %vm998 = vmor %vm996, %vm997
    %v999 = vsel %vm998, %v990, %v995
    %v1000 = vrsqrt.pop %v989
    %v1001 = vmul.f32 %v1000, %v989
    %v1002 = vmul.f32 %v1001, %v1000
    %v1003 = vmul.f32 0.5, %v1002
    %v1004 = vsub.f32 1.5, %v1003
    %v1005 = vmul.f32 %v1000, %v1004
    %vm1006 = vweird.f32 %v989
    %vm1007 = vweird.f32 %v1000
    %vm1008 = vmor %vm1006, %vm1007
    %v1009 = vsel %vm1008, %v1000, %v1005
    %v1010 = vmul.f32 %v986, %v999
    %v1011 = vmul.f32 %v987, %v1009
    %v1012 = vperm.slane %v598, 6
    %v1013 = vmul.f32 %v1010, %v1012
    %v1014 = vmul.f32 %v1011, %v1012
    %v1015 = vperm.slane %v598, 7
    %v1016 = vadd.f32 %v1013, %v1015
    %v1017 = vadd.f32 %v1014, %v1015
    %v1018 = vld [vmem:[#allocation2 + $0x6a] sm:$0x1]
    %v1019 = vld [vmem:[#allocation2 + $0x6b] sm:$0x1]
    %v1020 = vsel %vm95, %v1016, 0.0
    %1021 = vadd.xlane.f32.xlu0 %v1020
    %v1022 = vpop.xlane.xlu0 %1021
    %v1023 = vsel %vm95, %v1017, 0.0
    %1024 = vadd.xlane.f32.xlu0 %v1023
    %v1025 = vpop.xlane.xlu0 %1024
    %v1026 = vmul.f32 %v1022, %v411
    %v1027 = vmul.f32 %v1025, %v411
    %v1028 = vmul.f32 %v1016, %v1016
    %v1029 = vmul.f32 %v1017, %v1017
    %v1030 = vsel %vm95, %v1028, 0.0
    %1031 = vadd.xlane.f32.xlu0 %v1030
    %v1032 = vpop.xlane.xlu0 %1031
    %v1033 = vsel %vm95, %v1029, 0.0
    %1034 = vadd.xlane.f32.xlu0 %v1033
    %v1035 = vpop.xlane.xlu0 %1034
    %v1036 = vmul.f32 %v1032, %v411
    %v1037 = vmul.f32 %v1035, %v411
    %v1038 = vmul.f32 %v1026, %v1026
    %v1039 = vmul.f32 %v1027, %v1027
    %v1040 = vsub.f32 %v1036, %v1038
    %v1041 = vsub.f32 %v1037, %v1039
    %v1042 = vsub.f32 %v1016, %v1026
    %v1043 = vsub.f32 %v1017, %v1027
    %v1044 = vadd.f32 %v1040, 1e-05
    %v1045 = vadd.f32 %v1041, 1e-05
    %v1046 = vrsqrt.pop %v1044
    %v1047 = vmul.f32 %v1046, %v1044
    %v1048 = vmul.f32 %v1047, %v1046
    %v1049 = vmul.f32 0.5, %v1048
    %v1050 = vsub.f32 1.5, %v1049
    %v1051 = vmul.f32 %v1046, %v1050
    %vm1052 = vweird.f32 %v1044
    %vm1053 = vweird.f32 %v1046
    %vm1054 = vmor %vm1052, %vm1053
    %v1055 = vsel %vm1054, %v1046, %v1051
    %v1056 = vrsqrt.pop %v1045
    %v1057 = vmul.f32 %v1056, %v1045
    %v1058 = vmul.f32 %v1057, %v1056
    %v1059 = vmul.f32 0.5, %v1058
    %v1060 = vsub.f32 1.5, %v1059
    %v1061 = vmul.f32 %v1056, %v1060
    %vm1062 = vweird.f32 %v1045
    %vm1063 = vweird.f32 %v1056
    %vm1064 = vmor %vm1062, %vm1063
    %v1065 = vsel %vm1064, %v1056, %v1061
    %v1066 = vmul.f32 %v1042, %v1055
    %v1067 = vmul.f32 %v1043, %v1065
    %v1068 = vperm.slane %v1018, 0
    %v1069 = vmul.f32 %v1066, %v1068
    %v1070 = vmul.f32 %v1067, %v1068
    %v1071 = vperm.slane %v1019, 0
    %v1072 = vadd.f32 %v1069, %v1071
    %v1073 = vadd.f32 %v1070, %v1071
    %v1074 = vld [vmem:[#allocation2 + $0x68] sm:$0x3]
    %vm1075 = vcmask 130048
    %v1077 = vsel %vm1075, %v1074, 0
    %1079 = vmatpush.msra.mxu0 0.0
    %1080 = vmatpush.msra.mxu0 0.0
    %1081 = vmatpush.msra.mxu0 0.0
    %1082 = vmatpush.msra.mxu0 0.0
    %1083 = vmatpush.msra.mxu0 0.0
    %1084 = vmatpush.msra.mxu0 0.0
    %1085 = vmatpush.msra.mxu0 0.0
    %1086 = vmatpush.msra.mxu0 0.0
    %1087 = vmatpush.msra.mxu0 0.0
    %1088 = vmatpush.msra.mxu0 0.0
    %1089 = vmatpush.msra.mxu0 0.0
    %1090 = vmatpush.msra.mxu0 0.0
    %1091 = vmatpush.msra.mxu0 0.0
    %1092 = vmatpush.msra.mxu0 0.0
    %1093 = vmatpush.msra.mxu0 %v1073
    %1094 = vmatpush.msra.mxu0 %v1072
    %1095 = vmatmul.f32.gmra.mxu0 %v1077
    %v1096 = vpop.f32.mrf.mxu0
    %v1097 = vadd.f32 0.0, %v1096
    %1098 = vdwg.mxu0
    %v1099 = vld [vmem:[#allocation2 + $0x70] sm:$0xff]
    %v1100 = vld [vmem:[#allocation2 + $0x78] sm:$0xff]
    %v1101 = vld [vmem:[#allocation2 + $0x80] sm:$0xff]
    %v1102 = vld [vmem:[#allocation2 + $0x88] sm:$0xff]
    %v1103 = vld [vmem:[#allocation2 + $0x6c] sm:$0x1]
    %v1104 = vperm.slane %v1103, 0
    %v1106 = vsel %vm95, %v1097, 0
    %1108 = vmatpush.msra.mxu0 0.0
    %1109 = vmatpush.msra.mxu0 0.0
    %1110 = vmatpush.msra.mxu0 0.0
    %1111 = vmatpush.msra.mxu0 0.0
    %1112 = vmatpush.msra.mxu0 0.0
    %1113 = vmatpush.msra.mxu0 0.0
    %1114 = vmatpush.msra.mxu0 0.0
    %1115 = vmatpush.msra.mxu0 0.0
    %1116 = vmatpush.msra.mxu0 0.0
    %1117 = vmatpush.msra.mxu0 0.0
    %1118 = vmatpush.msra.mxu0 0.0
    %1119 = vmatpush.msra.mxu0 0.0
    %1120 = vmatpush.msra.mxu0 %v1102
    %1121 = vmatpush.msra.mxu0 %v1101
    %1122 = vmatpush.msra.mxu0 %v1100
    %1123 = vmatpush.msra.mxu0 %v1099
    %1124 = vmatmul.f32.gmra.mxu0 %v1106
    %v1125 = vpop.f32.mrf.mxu0
    %v1126 = vadd.f32 %v1104, %v1125
    %1127 = vdwg.mxu0
    %1128 = vst [vmem:[#allocation5] sm:$0x3] %v1126
    // Predicated region
    $region14: #{tpu_custom_call.1} parent=1 // pred_check
      _
    $region15: #{tpu_custom_call.1} parent=1 // pred_check_branch
      %1130 = sbr.rel (0) target = $region17
    $region16: #{tpu_custom_call.1} parent=1 // pred_region
      %1132 = vsyncadd [#allocation4], 0
      %s1134 = sshll.u32 [#allocation5], 4
      %s1135 = int_to_ptr.vmem [resolvable:$true] %s1134
      %s1136 = sshll.u32 %s2, 4
      %s1137 = int_to_ptr.hbm [resolvable:$true] %s1136
      %1139 = dma.vmem_to_hbm [thread:$0]  %s1135, 32, %s1137, [#allocation4]
    $region17: #{tpu_custom_call.1} parent=1 // pred_fallthru
      _
    // Predicated region
    $region18: #{tpu_custom_call.1} parent=1 // pred_check
      _
    $region19: #{tpu_custom_call.1} parent=1 // pred_check_branch
      %1141 = sbr.rel (0) target = $region21
    $region20: #{tpu_custom_call.1} parent=1 // pred_region
      %1143 = dma.done [#allocation4], 32
    $region21: #{tpu_custom_call.1} parent=1 // pred_fallthru
      _
    %1144 = vsyncpa [#allocation3], 1
    %1145 = vsyncpa [#allocation4], 1

</llo_original>
